<compile_context>
chip_gen: v7x
topology: tpu7x:2x2x1
jax: 0.10.0
libtpu: 0.0.40
codegen_flags: <defaults>
</compile_context>

<pallas_src>
import functools

import jax
import jax.numpy as jnp
from jax import lax
from jax.experimental import pallas as pl
from jax.experimental.pallas import tpu as pltpu


def _round_up(n, m):
    return (n + m - 1) // m * m


def _pad_to(a, shape, dtype):
    """Cast to dtype and zero-pad to `shape` (no-op copy if already matching)."""
    a = a.astype(dtype)
    if a.shape == tuple(shape):
        return a
    pads = [(0, t - s) for s, t in zip(a.shape, shape)]
    return jnp.pad(a, pads)


def _vmem_capacity_bytes():
    try:
        return int(pltpu.get_tpu_info().vmem_capacity_bytes)
    except Exception:
        return 64 * 1024 * 1024  # conservative (v7x per-TensorCore VMEM)


# --------------------------------------------------------------------------
# Kernel
# --------------------------------------------------------------------------
def _sae_kernel(x_ref, w_enc_ref, b_enc_ref, w_dec_ref, feat_ref, rec_ref, *, k):
    """One (tile_b, D) batch tile. Weights are VMEM-resident across the grid."""
    mm_dtype = w_enc_ref.dtype
    x = x_ref[...].astype(mm_dtype)                              # (Tb, Dp)

    # Encoder: Linear + ReLU.  bf16 operands on the MXU, f32 accumulation.
    pre = jnp.dot(x, w_enc_ref[...], preferred_element_type=jnp.float32)
    features = jnp.maximum(pre + b_enc_ref[...], 0.0)            # (Tb, Hp) f32, >= 0

    if k is None:
        sparse = features
    else:
        tb, hp = features.shape
        hb = max((hp - 1).bit_length(), 1)
        # Fused sort key (single reduction per step): high bits = the f32 bit
        # pattern of the activation (monotonic because features >= 0 and
        # finite), low `hb` bits = reversed column index so ties resolve to the
        # lowest column and every key in a row is unique.  Comparison
        # granularity is 2^-(23-hb) relative; stored VALUES stay exact f32.
        col = lax.broadcasted_iota(jnp.int32, (tb, hp), 1)
        rev = jnp.int32(hp - 1) - col
        val_bits = pltpu.bitcast(features, jnp.int32)
        keys = jnp.bitwise_or(jnp.bitwise_and(val_bits, jnp.int32(-(1 << hb))), rev)
        # Zero-padded hidden columns (weight 0, bias 0) always rank below every
        # real column, so with k <= H they can never be selected.

        if k <= 32:
            # Iterative: knock out the (unique) per-row max key, k times.
            def knock(_, kk):
                kmax = jnp.max(kk, axis=-1, keepdims=True)       # 1 XLU reduction
                return jnp.where(kk == kmax, jnp.int32(-1), kk)

            keys = lax.fori_loop(0, k, knock, keys, unroll=bool(k <= 16))
            selected = keys < 0
        else:
            # Per-row binary search for the k-th largest key (~32 passes,
            # independent of k).  Keys are unique, so the count hits k exactly.
            def step(_, carry):
                lo, hi = carry
                mid = lo + lax.shift_right_logical(hi - lo, 1)
                cnt = jnp.sum((keys >= mid).astype(jnp.int32),
                              axis=-1, keepdims=True)
                take = cnt >= k
                return jnp.where(take, mid, lo), jnp.where(take, hi, mid)

            lo0 = jnp.zeros((tb, 1), jnp.int32)
            hi0 = jnp.full((tb, 1), jnp.iinfo(jnp.int32).max, jnp.int32)
            lo, _ = lax.fori_loop(0, 32, step, (lo0, hi0))
            selected = keys >= lo

        sparse = jnp.where(selected, features, 0.0)

    feat_ref[...] = sparse
    # Decoder: Linear, no bias.
    rec_ref[...] = jnp.dot(sparse.astype(mm_dtype), w_dec_ref[...],
                           preferred_element_type=jnp.float32)


def _build_call(*, k, tile_b, B_p, D_p, H_p, weight_mode, vmem_limit, cost):
    weight_kwargs = {} if weight_mode is None else {"pipeline_mode": weight_mode}
    return pl.pallas_call(
        functools.partial(_sae_kernel, k=k),
        out_shape=(
            jax.ShapeDtypeStruct((B_p, H_p), jnp.float32),   # sparse_features
            jax.ShapeDtypeStruct((B_p, D_p), jnp.float32),   # reconstruction
        ),
        grid=(B_p // tile_b,),
        in_specs=[
            pl.BlockSpec((tile_b, D_p), lambda i: (i, 0)),          # stream x
            pl.BlockSpec((D_p, H_p), lambda i: (0, 0), **weight_kwargs),
            pl.BlockSpec((1, H_p), lambda i: (0, 0), **weight_kwargs),
            pl.BlockSpec((H_p, D_p), lambda i: (0, 0), **weight_kwargs),
        ],
        out_specs=(
            pl.BlockSpec((tile_b, H_p), lambda i: (i, 0)),
            pl.BlockSpec((tile_b, D_p), lambda i: (i, 0)),
        ),
        compiler_params=pltpu.CompilerParams(
            dimension_semantics=("parallel",),
            vmem_limit_bytes=vmem_limit,
        ),
        cost_estimate=cost,
    )


def _pick_tile_b(B, D_p, H_p, w_bytes, budget, granule, requested):
    if requested is not None:
        return _round_up(min(requested, _round_up(B, granule)), granule)

    def usage(tb):
        weights = 2 * (D_p * H_p + H_p * D_p) * w_bytes + 2 * H_p * 4  # worst case 2x
        stream = 2 * tb * (2 * D_p + H_p) * 4                          # x + feat + rec
        temps = tb * H_p * (4 * 4 + w_bytes) + tb * D_p * (4 + w_bytes)
        return weights + stream + temps

    tb = granule
    for cand in (256, 128, 64, 32, 16, 8):
        if cand < granule or cand % granule:
            continue
        if usage(cand) <= budget:
            tb = cand
            break
    return min(tb, _round_up(B, granule))


# --------------------------------------------------------------------------
# Public wrapper
# --------------------------------------------------------------------------
def make_topk_sae(w_enc, b_enc, w_dec, k=None, *,
                  matmul_dtype=jnp.bfloat16, tile_b=None):
    """Build a TopK-SAE forward(x) with weights prepared once.

    w_enc: (D, H)  encoder weight (PyTorch weight transposed)
    b_enc: (H,)    encoder bias
    w_dec: (H, D)  decoder weight (PyTorch weight transposed), no bias
    k:     int or None
    matmul_dtype: MXU operand dtype (bf16 default; accumulation stays f32)
    """
    D, H = w_enc.shape
    assert b_enc.shape == (H,)
    assert w_dec.shape == (H, D)
    if k is not None:
        assert 1 <= k <= H, "k must satisfy 1 <= k <= hidden_dim"

    D_p, H_p = _round_up(D, 128), _round_up(H, 128)
    w_bytes = jnp.dtype(matmul_dtype).itemsize
    granule = 16 if w_bytes < 4 else 8      # bf16 sublane packing -> 16 rows

    # Weights padded / cast ONCE (padding skipped if D/H already aligned).
    w_enc_p = _pad_to(w_enc, (D_p, H_p), matmul_dtype)
    b_enc_p = _pad_to(b_enc.reshape(1, H), (1, H_p), jnp.float32)
    w_dec_p = _pad_to(w_dec, (H_p, D_p), matmul_dtype)

    vmem_limit = int(0.85 * _vmem_capacity_bytes())

    # Resident weights: request single buffering; fall back if unsupported.
    state = {"weight_mode": pl.Buffered(1)}

    def forward(x):
        assert x.ndim == 2 and x.shape[1] == D
        B = x.shape[0]
        tb = _pick_tile_b(B, D_p, H_p, w_bytes, vmem_limit, granule, tile_b)
        B_p = _round_up(B, tb)
        x_p = _pad_to(x, (B_p, D_p), jnp.float32)

        cost = pl.CostEstimate(
            flops=4 * B_p * D_p * H_p,          # encoder + decoder matmuls
            transcendentals=0,
            bytes_accessed=(x_p.size * 4
                            + (w_enc_p.size + w_dec_p.size) * w_bytes
                            + b_enc_p.size * 4
                            + B_p * H_p * 4 + B_p * D_p * 4),
        )

        while True:
            call = _build_call(k=k, tile_b=tb, B_p=B_p, D_p=D_p, H_p=H_p,
                               weight_mode=state["weight_mode"],
                               vmem_limit=vmem_limit, cost=cost)
            try:
                feat, rec = call(x_p, w_enc_p, b_enc_p, w_dec_p)
                break
            except Exception:
                if state["weight_mode"] is None:
                    raise
                # pl.Buffered(1) not accepted by this build -> default
                # double buffering (identical results, 2x weight VMEM).
                state["weight_mode"] = None

        return feat[:B, :H], rec[:B, :D]

    return forward


# --------------------------------------------------------------------------
# Pure-JAX reference + checks (demo only)
# --------------------------------------------------------------------------
def _reference(x, w_enc, b_enc, w_dec, k, matmul_dtype=jnp.float32):
    f32 = jnp.float32
    prec = lax.Precision.HIGHEST if matmul_dtype == f32 else None
    pre = jnp.dot(x.astype(matmul_dtype), w_enc.astype(matmul_dtype),
                  precision=prec, preferred_element_type=f32) + b_enc
    dense = jax.nn.relu(pre)
    if k is None:
        sparse = dense
    else:
        vals, idx = lax.top_k(dense, k)
        sparse = jax.vmap(lambda s, i, v: s.at[i].set(v))(
            jnp.zeros_like(dense), idx, vals)
    rec = jnp.dot(sparse.astype(matmul_dtype), w_dec.astype(matmul_dtype),
                  precision=prec, preferred_element_type=f32)
    return dense, sparse, rec


def _check(name, feat, rec, dense, sparse_ref, rec_ref, w_dec, k, mm_dtype, tol):
    if k is None:
        assert bool(jnp.allclose(feat, sparse_ref, atol=tol, rtol=tol)), f"{name}: feat"
        assert bool(jnp.allclose(rec, rec_ref, atol=tol, rtol=tol)), f"{name}: rec"
        return
    # At most k stored activations per row.
    assert int(jnp.max(jnp.sum(feat != 0, axis=1))) <= k, f"{name}: >k nonzeros"
    if (bool(jnp.allclose(feat, sparse_ref, atol=tol, rtol=tol))
            and bool(jnp.allclose(rec, rec_ref, atol=tol, rtol=tol))):
        return
    # Near-ties at the top-k boundary may legally resolve differently than
    # lax.top_k; validate the kernel output on its own terms instead.
    order_tol = max(tol, 1e-3)
    nz = feat != 0
    assert bool(jnp.allclose(jnp.where(nz, feat - dense, 0.0), 0.0,
                             atol=order_tol)), f"{name}: selected values"
    sel_min = jnp.min(jnp.where(nz, dense, jnp.inf), axis=1)
    unsel_max = jnp.max(jnp.where(nz, -jnp.inf, dense), axis=1)
    assert bool(jnp.all(sel_min >= unsel_max - order_tol)), f"{name}: not a top-k"
    prec = lax.Precision.HIGHEST if mm_dtype == jnp.float32 else None
    rec_chk = jnp.dot(feat.astype(mm_dtype), w_dec.astype(mm_dtype),
                      precision=prec, preferred_element_type=jnp.float32)
    assert bool(jnp.allclose(rec, rec_chk, atol=max(5 * tol, 1e-3),
                             rtol=max(5 * tol, 1e-3))), f"{name}: decoder"


if __name__ == "__main__":
    B, D, H = 64, 128, 256

    key = jax.random.PRNGKey(0)
    kx, ke, kb, kd = jax.random.split(key, 4)
    x = jax.random.normal(kx, (B, D), dtype=jnp.float32)
    w_enc = jax.random.uniform(ke, (D, H), jnp.float32,
                               minval=-1.0 / (D ** 0.5), maxval=1.0 / (D ** 0.5))
    b_enc = jax.random.uniform(kb, (H,), jnp.float32,
                               minval=-1.0 / (D ** 0.5), maxval=1.0 / (D ** 0.5))
    w_dec = jax.random.uniform(kd, (H, D), jnp.float32,
                               minval=-1.0 / (H ** 0.5), maxval=1.0 / (H ** 0.5))

    # 1) f32 matmuls, small k (fused iterative top-k), multi-tile grid.
    f1 = make_topk_sae(w_enc, b_enc, w_dec, k=8, matmul_dtype=jnp.float32, tile_b=16)
    feat, rec = f1(x)
    jax.block_until_ready((feat, rec))
    dense, sref, rref = _reference(x, w_enc, b_enc, w_dec, 8)
    _check("f32/k=8", feat, rec, dense, sref, rref, w_dec, 8, jnp.float32, 1e-4)

    # 2) f32 matmuls, large k (binary-search top-k path).
    f2 = make_topk_sae(w_enc, b_enc, w_dec, k=48, matmul_dtype=jnp.float32)
    feat, rec = f2(x)
    jax.block_until_ready((feat, rec))
    dense, sref, rref = _reference(x, w_enc, b_enc, w_dec, 48)
    _check("f32/k=48", feat, rec, dense, sref, rref, w_dec, 48, jnp.float32, 1e-4)

    # 3) k=None path (no sparsification).
    f3 = make_topk_sae(w_enc, b_enc, w_dec, k=None, matmul_dtype=jnp.float32)
    feat, rec = f3(x)
    jax.block_until_ready((feat, rec))
    dense, sref, rref = _reference(x, w_enc, b_enc, w_dec, None)
    _check("f32/k=None", feat, rec, dense, sref, rref, w_dec, None, jnp.float32, 1e-4)

    # 4) Default fast path: bf16 MXU operands, f32 accumulation / top-k math.
    f4 = make_topk_sae(w_enc, b_enc, w_dec, k=8)           # matmul_dtype=bf16
    feat, rec = f4(x)
    jax.block_until_ready((feat, rec))
    dense, sref, rref = _reference(x, w_enc, b_enc, w_dec, 8,
                                   matmul_dtype=jnp.bfloat16)
    _check("bf16/k=8", feat, rec, dense, sref, rref, w_dec, 8, jnp.bfloat16, 2e-3)

    print("KERNEL_OK")
</pallas_src>

<mosaic_0001>
module attributes {stable_mosaic.version = 11 : i64} {
  func.func @_sae_kernel(%arg0: i32, %arg1: memref<16x128xf32, #tpu.memory_space<vmem>>, %arg2: memref<128x256xf32, #tpu.memory_space<vmem>>, %arg3: memref<1x256xf32, #tpu.memory_space<vmem>>, %arg4: memref<256x128xf32, #tpu.memory_space<vmem>>, %arg5: memref<16x256xf32, #tpu.memory_space<vmem>>, %arg6: memref<16x128xf32, #tpu.memory_space<vmem>>) attributes {dimension_semantics = [#tpu.dimension_semantics<parallel>], iteration_bounds = array<i64: 4>, scalar_prefetch = 0 : i64, scratch_operands = 0 : i64, tpu.core_type = #tpu.core_type<tc>, window_params = [{transform_indices = @transform_0, window_bounds = array<i64: 16, 128>}, {pipeline_mode = #tpu.pipeline_mode<synchronous>, transform_indices = @transform_1, window_bounds = array<i64: 128, 256>}, {pipeline_mode = #tpu.pipeline_mode<synchronous>, transform_indices = @transform_2, window_bounds = array<i64: 1, 256>}, {pipeline_mode = #tpu.pipeline_mode<synchronous>, transform_indices = @transform_3, window_bounds = array<i64: 256, 128>}, {transform_indices = @transform_4, window_bounds = array<i64: 16, 256>}, {transform_indices = @transform_5, window_bounds = array<i64: 16, 128>}]} {
    %c0 = arith.constant 0 : index
    %c0_0 = arith.constant 0 : index
    %0 = vector.load %arg1[%c0, %c0_0] : memref<16x128xf32, #tpu.memory_space<vmem>>, vector<16x128xf32>
    %c0_1 = arith.constant 0 : index
    %c0_2 = arith.constant 0 : index
    %1 = vector.load %arg2[%c0_1, %c0_2] : memref<128x256xf32, #tpu.memory_space<vmem>>, vector<128x256xf32>
    %cst = arith.constant dense<0.000000e+00> : vector<16x256xf32>
    %2 = tpu.matmul %0, %1, %cst {dimension_numbers = #tpu.dot_dimension_numbers<[1], [0], [0], [1], [0, 0, 1, 1], [], []>} : vector<16x128xf32>, vector<128x256xf32>, vector<16x256xf32> -> vector<16x256xf32>
    %c0_3 = arith.constant 0 : index
    %c0_4 = arith.constant 0 : index
    %3 = vector.load %arg3[%c0_3, %c0_4] : memref<1x256xf32, #tpu.memory_space<vmem>>, vector<1x256xf32>
    %4 = vector.broadcast %3 : vector<1x256xf32> to vector<16x256xf32>
    %5 = arith.addf %2, %4 : vector<16x256xf32>
    %cst_5 = arith.constant 0.000000e+00 : f32
    %6 = vector.broadcast %cst_5 : f32 to vector<16x256xf32>
    %7 = arith.maximumf %5, %6 : vector<16x256xf32>
    %8 = tpu.iota {dimensions = array<i32: 1>} : vector<16x256xi32>
    %c255_i32 = arith.constant 255 : i32
    %9 = vector.broadcast %c255_i32 : i32 to vector<16x256xi32>
    %10 = arith.subi %9, %8 : vector<16x256xi32>
    %11 = tpu.bitcast %7 : vector<16x256xf32> -> vector<16x256xi32>
    %c-256_i32 = arith.constant -256 : i32
    %12 = vector.broadcast %c-256_i32 : i32 to vector<16x256xi32>
    %13 = arith.andi %11, %12 : vector<16x256xi32>
    %14 = arith.ori %13, %10 : vector<16x256xi32>
    %c0_i32 = arith.constant 0 : i32
    %cst_6 = arith.constant dense<-2147483648> : vector<16xi32>
    %15 = vector.multi_reduction <maxsi>, %14, %cst_6 [1] : vector<16x256xi32> to vector<16xi32>
    %16 = vector.shape_cast %15 : vector<16xi32> to vector<16x1xi32>
    %17 = vector.broadcast %16 : vector<16x1xi32> to vector<16x256xi32>
    %18 = arith.cmpi eq, %14, %17 : vector<16x256xi32>
    %c-1_i32 = arith.constant -1 : i32
    %19 = vector.broadcast %c-1_i32 : i32 to vector<16x256xi32>
    %20 = arith.select %18, %19, %14 : vector<16x256xi1>, vector<16x256xi32>
    %c1_i32 = arith.constant 1 : i32
    %cst_7 = arith.constant dense<-2147483648> : vector<16xi32>
    %21 = vector.multi_reduction <maxsi>, %20, %cst_7 [1] : vector<16x256xi32> to vector<16xi32>
    %22 = vector.shape_cast %21 : vector<16xi32> to vector<16x1xi32>
    %23 = vector.broadcast %22 : vector<16x1xi32> to vector<16x256xi32>
    %24 = arith.cmpi eq, %20, %23 : vector<16x256xi32>
    %c-1_i32_8 = arith.constant -1 : i32
    %25 = vector.broadcast %c-1_i32_8 : i32 to vector<16x256xi32>
    %26 = arith.select %24, %25, %20 : vector<16x256xi1>, vector<16x256xi32>
    %c2_i32 = arith.constant 2 : i32
    %cst_9 = arith.constant dense<-2147483648> : vector<16xi32>
    %27 = vector.multi_reduction <maxsi>, %26, %cst_9 [1] : vector<16x256xi32> to vector<16xi32>
    %28 = vector.shape_cast %27 : vector<16xi32> to vector<16x1xi32>
    %29 = vector.broadcast %28 : vector<16x1xi32> to vector<16x256xi32>
    %30 = arith.cmpi eq, %26, %29 : vector<16x256xi32>
    %c-1_i32_10 = arith.constant -1 : i32
    %31 = vector.broadcast %c-1_i32_10 : i32 to vector<16x256xi32>
    %32 = arith.select %30, %31, %26 : vector<16x256xi1>, vector<16x256xi32>
    %c3_i32 = arith.constant 3 : i32
    %cst_11 = arith.constant dense<-2147483648> : vector<16xi32>
    %33 = vector.multi_reduction <maxsi>, %32, %cst_11 [1] : vector<16x256xi32> to vector<16xi32>
    %34 = vector.shape_cast %33 : vector<16xi32> to vector<16x1xi32>
    %35 = vector.broadcast %34 : vector<16x1xi32> to vector<16x256xi32>
    %36 = arith.cmpi eq, %32, %35 : vector<16x256xi32>
    %c-1_i32_12 = arith.constant -1 : i32
    %37 = vector.broadcast %c-1_i32_12 : i32 to vector<16x256xi32>
    %38 = arith.select %36, %37, %32 : vector<16x256xi1>, vector<16x256xi32>
    %c4_i32 = arith.constant 4 : i32
    %cst_13 = arith.constant dense<-2147483648> : vector<16xi32>
    %39 = vector.multi_reduction <maxsi>, %38, %cst_13 [1] : vector<16x256xi32> to vector<16xi32>
    %40 = vector.shape_cast %39 : vector<16xi32> to vector<16x1xi32>
    %41 = vector.broadcast %40 : vector<16x1xi32> to vector<16x256xi32>
    %42 = arith.cmpi eq, %38, %41 : vector<16x256xi32>
    %c-1_i32_14 = arith.constant -1 : i32
    %43 = vector.broadcast %c-1_i32_14 : i32 to vector<16x256xi32>
    %44 = arith.select %42, %43, %38 : vector<16x256xi1>, vector<16x256xi32>
    %c5_i32 = arith.constant 5 : i32
    %cst_15 = arith.constant dense<-2147483648> : vector<16xi32>
    %45 = vector.multi_reduction <maxsi>, %44, %cst_15 [1] : vector<16x256xi32> to vector<16xi32>
    %46 = vector.shape_cast %45 : vector<16xi32> to vector<16x1xi32>
    %47 = vector.broadcast %46 : vector<16x1xi32> to vector<16x256xi32>
    %48 = arith.cmpi eq, %44, %47 : vector<16x256xi32>
    %c-1_i32_16 = arith.constant -1 : i32
    %49 = vector.broadcast %c-1_i32_16 : i32 to vector<16x256xi32>
    %50 = arith.select %48, %49, %44 : vector<16x256xi1>, vector<16x256xi32>
    %c6_i32 = arith.constant 6 : i32
    %cst_17 = arith.constant dense<-2147483648> : vector<16xi32>
    %51 = vector.multi_reduction <maxsi>, %50, %cst_17 [1] : vector<16x256xi32> to vector<16xi32>
    %52 = vector.shape_cast %51 : vector<16xi32> to vector<16x1xi32>
    %53 = vector.broadcast %52 : vector<16x1xi32> to vector<16x256xi32>
    %54 = arith.cmpi eq, %50, %53 : vector<16x256xi32>
    %c-1_i32_18 = arith.constant -1 : i32
    %55 = vector.broadcast %c-1_i32_18 : i32 to vector<16x256xi32>
    %56 = arith.select %54, %55, %50 : vector<16x256xi1>, vector<16x256xi32>
    %c7_i32 = arith.constant 7 : i32
    %cst_19 = arith.constant dense<-2147483648> : vector<16xi32>
    %57 = vector.multi_reduction <maxsi>, %56, %cst_19 [1] : vector<16x256xi32> to vector<16xi32>
    %58 = vector.shape_cast %57 : vector<16xi32> to vector<16x1xi32>
    %59 = vector.broadcast %58 : vector<16x1xi32> to vector<16x256xi32>
    %60 = arith.cmpi eq, %56, %59 : vector<16x256xi32>
    %c-1_i32_20 = arith.constant -1 : i32
    %61 = vector.broadcast %c-1_i32_20 : i32 to vector<16x256xi32>
    %62 = arith.select %60, %61, %56 : vector<16x256xi1>, vector<16x256xi32>
    %c0_i32_21 = arith.constant 0 : i32
    %63 = vector.broadcast %c0_i32_21 : i32 to vector<16x256xi32>
    %64 = arith.cmpi slt, %62, %63 : vector<16x256xi32>
    %cst_22 = arith.constant 0.000000e+00 : f32
    %65 = vector.broadcast %cst_22 : f32 to vector<16x256xf32>
    %66 = arith.select %64, %7, %65 : vector<16x256xi1>, vector<16x256xf32>
    %c0_23 = arith.constant 0 : index
    %c0_24 = arith.constant 0 : index
    %67 = vector.load %arg5[%c0_23, %c0_24] : memref<16x256xf32, #tpu.memory_space<vmem>>, vector<16x256xf32>
    tpu.vector_store %arg5[%c0_23, %c0_24], %66 {strides = array<i32>} : memref<16x256xf32, #tpu.memory_space<vmem>>, vector<16x256xf32>,
    %c0_25 = arith.constant 0 : index
    %c0_26 = arith.constant 0 : index
    %68 = vector.load %arg4[%c0_25, %c0_26] : memref<256x128xf32, #tpu.memory_space<vmem>>, vector<256x128xf32>
    %cst_27 = arith.constant dense<0.000000e+00> : vector<16x128xf32>
    %69 = tpu.matmul %66, %68, %cst_27 {dimension_numbers = #tpu.dot_dimension_numbers<[1], [0], [0], [1], [0, 0, 1, 1], [], []>} : vector<16x256xf32>, vector<256x128xf32>, vector<16x128xf32> -> vector<16x128xf32>
    %c0_28 = arith.constant 0 : index
    %c0_29 = arith.constant 0 : index
    %70 = vector.load %arg6[%c0_28, %c0_29] : memref<16x128xf32, #tpu.memory_space<vmem>>, vector<16x128xf32>
    tpu.vector_store %arg6[%c0_28, %c0_29], %69 {strides = array<i32>} : memref<16x128xf32, #tpu.memory_space<vmem>>, vector<16x128xf32>,
    return
  }
  func.func @transform_0(%arg0: i32) -> (i32, i32) {
    %c0_i32 = arith.constant 0 : i32
    %c0_i32_0 = arith.constant 0 : i32
    return %arg0, %c0_i32 : i32, i32
  }
  func.func @transform_1(%arg0: i32) -> (i32, i32) {
    %c0_i32 = arith.constant 0 : i32
    %c0_i32_0 = arith.constant 0 : i32
    %c0_i32_1 = arith.constant 0 : i32
    return %c0_i32, %c0_i32_0 : i32, i32
  }
  func.func @transform_2(%arg0: i32) -> (i32, i32) {
    %c0_i32 = arith.constant 0 : i32
    %c0_i32_0 = arith.constant 0 : i32
    %c0_i32_1 = arith.constant 0 : i32
    return %c0_i32, %c0_i32_0 : i32, i32
  }
  func.func @transform_3(%arg0: i32) -> (i32, i32) {
    %c0_i32 = arith.constant 0 : i32
    %c0_i32_0 = arith.constant 0 : i32
    %c0_i32_1 = arith.constant 0 : i32
    return %c0_i32, %c0_i32_0 : i32, i32
  }
  func.func @transform_4(%arg0: i32) -> (i32, i32) {
    %c0_i32 = arith.constant 0 : i32
    %c0_i32_0 = arith.constant 0 : i32
    return %arg0, %c0_i32 : i32, i32
  }
  func.func @transform_5(%arg0: i32) -> (i32, i32) {
    %c0_i32 = arith.constant 0 : i32
    %c0_i32_0 = arith.constant 0 : i32
    return %arg0, %c0_i32 : i32, i32
  }
}

module attributes {stable_mosaic.version = 11 : i64} {
  func.func @_sae_kernel(%arg0: i32, %arg1: memref<16x128xf32, #tpu.memory_space<vmem>>, %arg2: memref<128x256xf32, #tpu.memory_space<vmem>>, %arg3: memref<1x256xf32, #tpu.memory_space<vmem>>, %arg4: memref<256x128xf32, #tpu.memory_space<vmem>>, %arg5: memref<16x256xf32, #tpu.memory_space<vmem>>, %arg6: memref<16x128xf32, #tpu.memory_space<vmem>>) attributes {dimension_semantics = [#tpu.dimension_semantics<parallel>], iteration_bounds = array<i64: 4>, scalar_prefetch = 0 : i64, scratch_operands = 0 : i64, tpu.core_type = #tpu.core_type<tc>, window_params = [{transform_indices = @transform_0, window_bounds = array<i64: 16, 128>}, {pipeline_mode = #tpu.pipeline_mode<synchronous>, transform_indices = @transform_1, window_bounds = array<i64: 128, 256>}, {pipeline_mode = #tpu.pipeline_mode<synchronous>, transform_indices = @transform_2, window_bounds = array<i64: 1, 256>}, {pipeline_mode = #tpu.pipeline_mode<synchronous>, transform_indices = @transform_3, window_bounds = array<i64: 256, 128>}, {transform_indices = @transform_4, window_bounds = array<i64: 16, 256>}, {transform_indices = @transform_5, window_bounds = array<i64: 16, 128>}]} {
    %c0 = arith.constant 0 : index
    %c0_0 = arith.constant 0 : index
    %0 = vector.load %arg1[%c0, %c0_0] : memref<16x128xf32, #tpu.memory_space<vmem>>, vector<16x128xf32>
    %c0_1 = arith.constant 0 : index
    %c0_2 = arith.constant 0 : index
    %1 = vector.load %arg2[%c0_1, %c0_2] : memref<128x256xf32, #tpu.memory_space<vmem>>, vector<128x256xf32>
    %cst = arith.constant dense<0.000000e+00> : vector<16x256xf32>
    %2 = tpu.matmul %0, %1, %cst {dimension_numbers = #tpu.dot_dimension_numbers<[1], [0], [0], [1], [0, 0, 1, 1], [], []>} : vector<16x128xf32>, vector<128x256xf32>, vector<16x256xf32> -> vector<16x256xf32>
    %c0_3 = arith.constant 0 : index
    %c0_4 = arith.constant 0 : index
    %3 = vector.load %arg3[%c0_3, %c0_4] : memref<1x256xf32, #tpu.memory_space<vmem>>, vector<1x256xf32>
    %4 = vector.broadcast %3 : vector<1x256xf32> to vector<16x256xf32>
    %5 = arith.addf %2, %4 : vector<16x256xf32>
    %cst_5 = arith.constant 0.000000e+00 : f32
    %6 = vector.broadcast %cst_5 : f32 to vector<16x256xf32>
    %7 = arith.maximumf %5, %6 : vector<16x256xf32>
    %8 = tpu.iota {dimensions = array<i32: 1>} : vector<16x256xi32>
    %c255_i32 = arith.constant 255 : i32
    %9 = vector.broadcast %c255_i32 : i32 to vector<16x256xi32>
    %10 = arith.subi %9, %8 : vector<16x256xi32>
    %11 = tpu.bitcast %7 : vector<16x256xf32> -> vector<16x256xi32>
    %c-256_i32 = arith.constant -256 : i32
    %12 = vector.broadcast %c-256_i32 : i32 to vector<16x256xi32>
    %13 = arith.andi %11, %12 : vector<16x256xi32>
    %14 = arith.ori %13, %10 : vector<16x256xi32>
    %c0_i32 = arith.constant 0 : i32
    %cst_6 = arith.constant dense<-2147483648> : vector<16xi32>
    %15 = vector.multi_reduction <maxsi>, %14, %cst_6 [1] : vector<16x256xi32> to vector<16xi32>
    %16 = vector.shape_cast %15 : vector<16xi32> to vector<16x1xi32>
    %17 = vector.broadcast %16 : vector<16x1xi32> to vector<16x256xi32>
    %18 = arith.cmpi eq, %14, %17 : vector<16x256xi32>
    %c-1_i32 = arith.constant -1 : i32
    %19 = vector.broadcast %c-1_i32 : i32 to vector<16x256xi32>
    %20 = arith.select %18, %19, %14 : vector<16x256xi1>, vector<16x256xi32>
    %c1_i32 = arith.constant 1 : i32
    %cst_7 = arith.constant dense<-2147483648> : vector<16xi32>
    %21 = vector.multi_reduction <maxsi>, %20, %cst_7 [1] : vector<16x256xi32> to vector<16xi32>
    %22 = vector.shape_cast %21 : vector<16xi32> to vector<16x1xi32>
    %23 = vector.broadcast %22 : vector<16x1xi32> to vector<16x256xi32>
    %24 = arith.cmpi eq, %20, %23 : vector<16x256xi32>
    %c-1_i32_8 = arith.constant -1 : i32
    %25 = vector.broadcast %c-1_i32_8 : i32 to vector<16x256xi32>
    %26 = arith.select %24, %25, %20 : vector<16x256xi1>, vector<16x256xi32>
    %c2_i32 = arith.constant 2 : i32
    %cst_9 = arith.constant dense<-2147483648> : vector<16xi32>
    %27 = vector.multi_reduction <maxsi>, %26, %cst_9 [1] : vector<16x256xi32> to vector<16xi32>
    %28 = vector.shape_cast %27 : vector<16xi32> to vector<16x1xi32>
    %29 = vector.broadcast %28 : vector<16x1xi32> to vector<16x256xi32>
    %30 = arith.cmpi eq, %26, %29 : vector<16x256xi32>
    %c-1_i32_10 = arith.constant -1 : i32
    %31 = vector.broadcast %c-1_i32_10 : i32 to vector<16x256xi32>
    %32 = arith.select %30, %31, %26 : vector<16x256xi1>, vector<16x256xi32>
    %c3_i32 = arith.constant 3 : i32
    %cst_11 = arith.constant dense<-2147483648> : vector<16xi32>
    %33 = vector.multi_reduction <maxsi>, %32, %cst_11 [1] : vector<16x256xi32> to vector<16xi32>
    %34 = vector.shape_cast %33 : vector<16xi32> to vector<16x1xi32>
    %35 = vector.broadcast %34 : vector<16x1xi32> to vector<16x256xi32>
    %36 = arith.cmpi eq, %32, %35 : vector<16x256xi32>
    %c-1_i32_12 = arith.constant -1 : i32
    %37 = vector.broadcast %c-1_i32_12 : i32 to vector<16x256xi32>
    %38 = arith.select %36, %37, %32 : vector<16x256xi1>, vector<16x256xi32>
    %c4_i32 = arith.constant 4 : i32
    %cst_13 = arith.constant dense<-2147483648> : vector<16xi32>
    %39 = vector.multi_reduction <maxsi>, %38, %cst_13 [1] : vector<16x256xi32> to vector<16xi32>
    %40 = vector.shape_cast %39 : vector<16xi32> to vector<16x1xi32>
    %41 = vector.broadcast %40 : vector<16x1xi32> to vector<16x256xi32>
    %42 = arith.cmpi eq, %38, %41 : vector<16x256xi32>
    %c-1_i32_14 = arith.constant -1 : i32
    %43 = vector.broadcast %c-1_i32_14 : i32 to vector<16x256xi32>
    %44 = arith.select %42, %43, %38 : vector<16x256xi1>, vector<16x256xi32>
    %c5_i32 = arith.constant 5 : i32
    %cst_15 = arith.constant dense<-2147483648> : vector<16xi32>
    %45 = vector.multi_reduction <maxsi>, %44, %cst_15 [1] : vector<16x256xi32> to vector<16xi32>
    %46 = vector.shape_cast %45 : vector<16xi32> to vector<16x1xi32>
    %47 = vector.broadcast %46 : vector<16x1xi32> to vector<16x256xi32>
    %48 = arith.cmpi eq, %44, %47 : vector<16x256xi32>
    %c-1_i32_16 = arith.constant -1 : i32
    %49 = vector.broadcast %c-1_i32_16 : i32 to vector<16x256xi32>
    %50 = arith.select %48, %49, %44 : vector<16x256xi1>, vector<16x256xi32>
    %c6_i32 = arith.constant 6 : i32
    %cst_17 = arith.constant dense<-2147483648> : vector<16xi32>
    %51 = vector.multi_reduction <maxsi>, %50, %cst_17 [1] : vector<16x256xi32> to vector<16xi32>
    %52 = vector.shape_cast %51 : vector<16xi32> to vector<16x1xi32>
    %53 = vector.broadcast %52 : vector<16x1xi32> to vector<16x256xi32>
    %54 = arith.cmpi eq, %50, %53 : vector<16x256xi32>
    %c-1_i32_18 = arith.constant -1 : i32
    %55 = vector.broadcast %c-1_i32_18 : i32 to vector<16x256xi32>
    %56 = arith.select %54, %55, %50 : vector<16x256xi1>, vector<16x256xi32>
    %c7_i32 = arith.constant 7 : i32
    %cst_19 = arith.constant dense<-2147483648> : vector<16xi32>
    %57 = vector.multi_reduction <maxsi>, %56, %cst_19 [1] : vector<16x256xi32> to vector<16xi32>
    %58 = vector.shape_cast %57 : vector<16xi32> to vector<16x1xi32>
    %59 = vector.broadcast %58 : vector<16x1xi32> to vector<16x256xi32>
    %60 = arith.cmpi eq, %56, %59 : vector<16x256xi32>
    %c-1_i32_20 = arith.constant -1 : i32
    %61 = vector.broadcast %c-1_i32_20 : i32 to vector<16x256xi32>
    %62 = arith.select %60, %61, %56 : vector<16x256xi1>, vector<16x256xi32>
    %c0_i32_21 = arith.constant 0 : i32
    %63 = vector.broadcast %c0_i32_21 : i32 to vector<16x256xi32>
    %64 = arith.cmpi slt, %62, %63 : vector<16x256xi32>
    %cst_22 = arith.constant 0.000000e+00 : f32
    %65 = vector.broadcast %cst_22 : f32 to vector<16x256xf32>
    %66 = arith.select %64, %7, %65 : vector<16x256xi1>, vector<16x256xf32>
    %c0_23 = arith.constant 0 : index
    %c0_24 = arith.constant 0 : index
    %67 = vector.load %arg5[%c0_23, %c0_24] : memref<16x256xf32, #tpu.memory_space<vmem>>, vector<16x256xf32>
    tpu.vector_store %arg5[%c0_23, %c0_24], %66 {strides = array<i32>} : memref<16x256xf32, #tpu.memory_space<vmem>>, vector<16x256xf32>,
    %c0_25 = arith.constant 0 : index
    %c0_26 = arith.constant 0 : index
    %68 = vector.load %arg4[%c0_25, %c0_26] : memref<256x128xf32, #tpu.memory_space<vmem>>, vector<256x128xf32>
    %cst_27 = arith.constant dense<0.000000e+00> : vector<16x128xf32>
    %69 = tpu.matmul %66, %68, %cst_27 {dimension_numbers = #tpu.dot_dimension_numbers<[1], [0], [0], [1], [0, 0, 1, 1], [], []>} : vector<16x256xf32>, vector<256x128xf32>, vector<16x128xf32> -> vector<16x128xf32>
    %c0_28 = arith.constant 0 : index
    %c0_29 = arith.constant 0 : index
    %70 = vector.load %arg6[%c0_28, %c0_29] : memref<16x128xf32, #tpu.memory_space<vmem>>, vector<16x128xf32>
    tpu.vector_store %arg6[%c0_28, %c0_29], %69 {strides = array<i32>} : memref<16x128xf32, #tpu.memory_space<vmem>>, vector<16x128xf32>,
    return
  }
  func.func @transform_0(%arg0: i32) -> (i32, i32) {
    %c0_i32 = arith.constant 0 : i32
    %c0_i32_0 = arith.constant 0 : i32
    return %arg0, %c0_i32 : i32, i32
  }
  func.func @transform_1(%arg0: i32) -> (i32, i32) {
    %c0_i32 = arith.constant 0 : i32
    %c0_i32_0 = arith.constant 0 : i32
    %c0_i32_1 = arith.constant 0 : i32
    return %c0_i32, %c0_i32_0 : i32, i32
  }
  func.func @transform_2(%arg0: i32) -> (i32, i32) {
    %c0_i32 = arith.constant 0 : i32
    %c0_i32_0 = arith.constant 0 : i32
    %c0_i32_1 = arith.constant 0 : i32
    return %c0_i32, %c0_i32_0 : i32, i32
  }
  func.func @transform_3(%arg0: i32) -> (i32, i32) {
    %c0_i32 = arith.constant 0 : i32
    %c0_i32_0 = arith.constant 0 : i32
    %c0_i32_1 = arith.constant 0 : i32
    return %c0_i32, %c0_i32_0 : i32, i32
  }
  func.func @transform_4(%arg0: i32) -> (i32, i32) {
    %c0_i32 = arith.constant 0 : i32
    %c0_i32_0 = arith.constant 0 : i32
    return %arg0, %c0_i32 : i32, i32
  }
  func.func @transform_5(%arg0: i32) -> (i32, i32) {
    %c0_i32 = arith.constant 0 : i32
    %c0_i32_0 = arith.constant 0 : i32
    return %arg0, %c0_i32 : i32, i32
  }
}

</mosaic_0001>

<llo_original>
// kernel: tpu_custom_call.1
$region0: #{tpu_custom_call.1}
  #allocation0 [shape = 'u32[]', space=smem, size = 0x4, offset = 0x4, fixed_abs, tag = 'smem constant byte address 0x4 - core index']
  #allocation1 [shape = 'u32[144,128]{1,0:T(1,128)}', space=vmem, size = 0x12000, scoped, tag = 'internal scratch']
  %s0 = inlined_call_operand.hbm [shape: f32[64,128], index: 0, kind: input, shape index: {}]
  %s1 = inlined_call_operand.hbm [shape: f32[128,256], index: 1, kind: input, shape index: {}]
  %s2 = inlined_call_operand.vmem [shape: f32[1,256], index: 2, kind: input, shape index: {}]
  %s3 = inlined_call_operand.hbm [shape: f32[256,128], index: 3, kind: input, shape index: {}]
  %s4 = inlined_call_operand.hbm [shape: f32[64,256], index: 4, kind: output, shape index: {0}]
  %s5 = inlined_call_operand.hbm [shape: f32[64,128], index: 5, kind: output, shape index: {1}]
  %6 = xla_tuple %s4, %s5
  %s7 = sld [smem:[#allocation0]]
  $region69: #{tpu_custom_call.1} parent=0
    _
  %s9 = ssub.s32 1, %s7
  %s10 = scalar_select 0, %s9, %s7
  $region1: #{tpu_custom_call.1} parent=0
    #allocation2 [shape = 'u8[16384]{0}', space=vmem, size = 0x4000, scoped, tag = 'input window, operand 0']
    #allocation3 [shape = 's32[2]{0}', space=sflag, size = 0x8, scoped, tag = 'scoped memory for tpu_custom_call.1']
    #allocation4 [shape = 's32[2]{0}', space=sflag, size = 0x8, scoped, tag = 'scoped memory for tpu_custom_call.1']
    #allocation5 [shape = 'u8[131072]{0}', space=vmem, size = 0x20000, scoped, tag = 'input window, operand 1, single buffered']
    #allocation6 [shape = 's32[1]{0}', space=sflag, size = 0x4, scoped, tag = 'scoped memory for tpu_custom_call.1']
    #allocation7 [shape = 'u8[131072]{0}', space=vmem, size = 0x20000, scoped, tag = 'input window, operand 3, single buffered']
    #allocation8 [shape = 'u8[32768]{0}', space=vmem, size = 0x8000, scoped, tag = 'output window, operand 0']
    #allocation9 [shape = 'u8[16384]{0}', space=vmem, size = 0x4000, scoped, tag = 'output window, operand 1']
    #allocation10 [shape = 's32[2]{0}', space=sflag, size = 0x8, scoped, tag = 'scoped memory for tpu_custom_call.1']
    %11 = vsyncpa [#allocation3], 0
    %s12 = scalar_lea.sflag [#allocation3], 1
    %13 = vsyncpa %s12, 0
    %14 = vsyncpa [#allocation6], 0
    %15 = vsyncpa [#allocation4], 0
    %s16 = scalar_lea.sflag [#allocation4], 1
    %17 = vsyncpa %s16, 0
    %18 = vsyncpa [#allocation10], 0
    %s19 = scalar_lea.sflag [#allocation10], 1
    %20 = vsyncpa %s19, 0
    loop: start=0, step=1, limit=6
    $region2: #{tpu_custom_call.1} parent=1 // loop_pre_header
      _
    $region3: #{tpu_custom_call.1} parent=1 // loop_header
      %s22 = sphi 0, %s26
      %p23 = scmp.ge.s32.totalorder %s22, 6
      %s32 = sphi 0, %s34
      %s35 = sphi 0, %s32
      %s36 = sphi 0, %s35
      %s52 = sphi 0, %s36
      %s56 = sphi 0, %s56
      %s58 = sphi 0, %s56
      %s59 = sphi 0, %s58
      %s73 = sphi 0, %s59
      %s77 = sphi 0, %s77
      %s79 = sphi 0, %s77
      %s80 = sphi 0, %s79
      %s94 = sphi 0, %s80
      %s98 = sphi 0, %s98
      %s100 = sphi 0, %s98
      %s101 = sphi 0, %s100
      %s115 = sphi 0, %s101
      %s121 = sphi 0, %s123
      %s124 = sphi 0, %s121
      %s125 = sphi 0, %s124
      %s141 = sphi 0, %s125
      %s147 = sphi 0, %s149
      %s150 = sphi 0, %s147
      %s151 = sphi 0, %s150
      %s167 = sphi 0, %s151
    $region4: #{tpu_custom_call.1} parent=1 // loop_header_branch
      %25 = sbr.rel (%p23) target = $region8
    $region5: #{tpu_custom_call.1} parent=1 // loop_body
      %s27 = ssub.s32 %s22, 1
      %s28 = ssub.s32 %s22, 2
      %s29 = sadd.s32 %s22, 1
      %s30 = ssub.s32 %s22, %s29
      %p31 = scmp.eq.s32.totalorder %s30, 0
      %s33 = sadd.s32 %s32, 1
      %s34 = scalar_select %p31, %s32, %s33
      %p37 = pneg %p31
      %p38 = scmp.eq.s32.totalorder %s22, 3
      %p39 = por %p37, %p38
      %p40 = scmp.ne.s32.totalorder %s32, %s35
      %p41 = scmp.eq.s32.totalorder %s22, 0
      %p42 = por %p40, %p41
      %p43 = scmp.ne.s32.totalorder %s32, %s35
      %p44 = scmp.eq.s32.totalorder %s27, 3
      %p45 = por %p43, %p44
      %p46 = scmp.ne.s32.totalorder %s35, %s36
      %p47 = scmp.eq.s32.totalorder %s27, 0
      %p48 = por %p46, %p47
      %p49 = scmp.ne.s32.totalorder %s35, %s36
      %p50 = scmp.eq.s32.totalorder %s28, 3
      %p51 = por %p49, %p50
      %p53 = scmp.ne.s32.totalorder %s36, %s52
      %p54 = scmp.eq.s32.totalorder %s28, 0
      %p55 = por %p53, %p54
      %s57 = sadd.s32 %s56, 1
      %p60 = scmp.eq.s32.totalorder %s22, 3
      %p61 = scmp.ne.s32.totalorder %s56, %s58
      %p62 = scmp.eq.s32.totalorder %s22, 0
      %p63 = por %p61, %p62
      %p64 = scmp.ne.s32.totalorder %s56, %s58
      %p65 = scmp.eq.s32.totalorder %s27, 3
      %p66 = por %p64, %p65
      %p67 = scmp.ne.s32.totalorder %s58, %s59
      %p68 = scmp.eq.s32.totalorder %s27, 0
      %p69 = por %p67, %p68
      %p70 = scmp.ne.s32.totalorder %s58, %s59
      %p71 = scmp.eq.s32.totalorder %s28, 3
      %p72 = por %p70, %p71
      %p74 = scmp.ne.s32.totalorder %s59, %s73
      %p75 = scmp.eq.s32.totalorder %s28, 0
      %p76 = por %p74, %p75
      %s78 = sadd.s32 %s77, 1
      %p81 = scmp.eq.s32.totalorder %s22, 3
      %p82 = scmp.ne.s32.totalorder %s77, %s79
      %p83 = scmp.eq.s32.totalorder %s22, 0
      %p84 = por %p82, %p83
      %p85 = scmp.ne.s32.totalorder %s77, %s79
      %p86 = scmp.eq.s32.totalorder %s27, 3
      %p87 = por %p85, %p86
      %p88 = scmp.ne.s32.totalorder %s79, %s80
      %p89 = scmp.eq.s32.totalorder %s27, 0
      %p90 = por %p88, %p89
      %p91 = scmp.ne.s32.totalorder %s79, %s80
      %p92 = scmp.eq.s32.totalorder %s28, 3
      %p93 = por %p91, %p92
      %p95 = scmp.ne.s32.totalorder %s80, %s94
      %p96 = scmp.eq.s32.totalorder %s28, 0
      %p97 = por %p95, %p96
      %s99 = sadd.s32 %s98, 1
      %p102 = scmp.eq.s32.totalorder %s22, 3
      %p103 = scmp.ne.s32.totalorder %s98, %s100
      %p104 = scmp.eq.s32.totalorder %s22, 0
      %p105 = por %p103, %p104
      %p106 = scmp.ne.s32.totalorder %s98, %s100
      %p107 = scmp.eq.s32.totalorder %s27, 3
      %p108 = por %p106, %p107
      %p109 = scmp.ne.s32.totalorder %s100, %s101
      %p110 = scmp.eq.s32.totalorder %s27, 0
      %p111 = por %p109, %p110
      %p112 = scmp.ne.s32.totalorder %s100, %s101
      %p113 = scmp.eq.s32.totalorder %s28, 3
      %p114 = por %p112, %p113
      %p116 = scmp.ne.s32.totalorder %s101, %s115
      %p117 = scmp.eq.s32.totalorder %s28, 0
      %p118 = por %p116, %p117
      %s119 = ssub.s32 %s22, %s29
      %p120 = scmp.eq.s32.totalorder %s119, 0
      %s122 = sadd.s32 %s121, 1
      %s123 = scalar_select %p120, %s121, %s122
      %p126 = pneg %p120
      %p127 = scmp.eq.s32.totalorder %s22, 3
      %p128 = por %p126, %p127
      %p129 = scmp.ne.s32.totalorder %s121, %s124
      %p130 = scmp.eq.s32.totalorder %s22, 0
      %p131 = por %p129, %p130
      %p132 = scmp.ne.s32.totalorder %s121, %s124
      %p133 = scmp.eq.s32.totalorder %s27, 3
      %p134 = por %p132, %p133
      %p135 = scmp.ne.s32.totalorder %s124, %s125
      %p136 = scmp.eq.s32.totalorder %s27, 0
      %p137 = por %p135, %p136
      %p138 = scmp.ne.s32.totalorder %s124, %s125
      %p139 = scmp.eq.s32.totalorder %s28, 3
      %p140 = por %p138, %p139
      %p142 = scmp.ne.s32.totalorder %s125, %s141
      %p143 = scmp.eq.s32.totalorder %s28, 0
      %p144 = por %p142, %p143
      %s145 = ssub.s32 %s22, %s29
      %p146 = scmp.eq.s32.totalorder %s145, 0
      %s148 = sadd.s32 %s147, 1
      %s149 = scalar_select %p146, %s147, %s148
      %p152 = pneg %p146
      %p153 = scmp.eq.s32.totalorder %s22, 3
      %p154 = por %p152, %p153
      %p155 = scmp.ne.s32.totalorder %s147, %s150
      %p156 = scmp.eq.s32.totalorder %s22, 0
      %p157 = por %p155, %p156
      %p158 = scmp.ne.s32.totalorder %s147, %s150
      %p159 = scmp.eq.s32.totalorder %s27, 3
      %p160 = por %p158, %p159
      %p161 = scmp.ne.s32.totalorder %s150, %s151
      %p162 = scmp.eq.s32.totalorder %s27, 0
      %p163 = por %p161, %p162
      %p164 = scmp.ne.s32.totalorder %s150, %s151
      %p165 = scmp.eq.s32.totalorder %s28, 3
      %p166 = por %p164, %p165
      %p168 = scmp.ne.s32.totalorder %s151, %s167
      %p169 = scmp.eq.s32.totalorder %s28, 0
      %p170 = por %p168, %p169
      %p171 = scmp.le.s32.totalorder 1, %s22
      %p172 = scmp.lt.s32.totalorder %s22, 5
      %p173 = pnand %p171, %p172
      %p174 = pneg %p173
      // Predicated region
      $region9: #{tpu_custom_call.1} parent=5 // pred_check
        _
      $region10: #{tpu_custom_call.1} parent=5 // pred_check_branch
        %176 = sbr.rel (%p173) target = $region12
      $region11: #{tpu_custom_call.1} parent=5 // pred_region
        %s177 = ssub.s32 %s22, 1
        // Predicated region
        $region13: #{tpu_custom_call.1} parent=11 // pred_check
          %p178 = pneg %p69
        $region14: #{tpu_custom_call.1} parent=11 // pred_check_branch
          %180 = sbr.rel (%p178) target = $region16
        $region15: #{tpu_custom_call.1} parent=11 // pred_region
          %s182 = ssub.s32 4096, 4096
          %183 = vsyncadd [#allocation6], %s182
          %s184 = sshll.u32 [#allocation5], 4
          %s185 = int_to_ptr.vmem [resolvable:$true] %s184
          %190 = dma.hbm_to_vmem [thread:$0]  %s1, 4096, %s185, [#allocation6], 256, 256, 16
        $region16: #{tpu_custom_call.1} parent=11 // pred_fallthru
          _
        // Predicated region
        $region17: #{tpu_custom_call.1} parent=11 // pred_check
          %p191 = pneg %p90
        $region18: #{tpu_custom_call.1} parent=11 // pred_check_branch
          %193 = sbr.rel (%p191) target = $region20
        $region19: #{tpu_custom_call.1} parent=11 // pred_region
          _
        $region20: #{tpu_custom_call.1} parent=11 // pred_fallthru
          _
        // Predicated region
        $region21: #{tpu_custom_call.1} parent=11 // pred_check
          %p194 = pneg %p111
        $region22: #{tpu_custom_call.1} parent=11 // pred_check_branch
          %196 = sbr.rel (%p194) target = $region24
        $region23: #{tpu_custom_call.1} parent=11 // pred_region
          %s198 = ssub.s32 4096, 4096
          %199 = vsyncadd [#allocation6], %s198
          %s200 = sshll.u32 [#allocation7], 4
          %s201 = int_to_ptr.vmem [resolvable:$true] %s200
          %206 = dma.hbm_to_vmem [thread:$0]  %s3, 4096, %s201, [#allocation6], 128, 128, 8
        $region24: #{tpu_custom_call.1} parent=11 // pred_fallthru
          _
      $region12: #{tpu_custom_call.1} parent=5 // pred_fallthru
        _
      %p207 = scmp.lt.s32.totalorder %s22, 4
      // Predicated region
      $region25: #{tpu_custom_call.1} parent=5 // pred_check
        %p208 = pneg %p207
      $region26: #{tpu_custom_call.1} parent=5 // pred_check_branch
        %210 = sbr.rel (%p208) target = $region28
      $region27: #{tpu_custom_call.1} parent=5 // pred_region
        // Predicated region
        $region29: #{tpu_custom_call.1} parent=27 // pred_check
          %p211 = pneg %p42
        $region30: #{tpu_custom_call.1} parent=27 // pred_check_branch
          %213 = sbr.rel (%p211) target = $region32
        $region31: #{tpu_custom_call.1} parent=27 // pred_region
          %s214 = sand.u32 %s32, 1
          %s215 = scalar_lea.sflag [#allocation3], %s214
          %s216 = sand.u32 %s32, 1
          %s217 = smul.addr %s216, 16
          %s218 = scalar_lea.vmem [#allocation2], %s217
          %s219 = smul.u32 2, %s22
          %s221 = ssub.s32 256, 256
          %222 = vsyncadd %s215, %s221
          %s223 = smul.addr %s219, 128
          %s224 = scalar_lea.hbm %s0, %s223
          %s225 = sshll.u32 %s218, 4
          %s226 = int_to_ptr.vmem [resolvable:$true] %s225
          %231 = dma.hbm_to_vmem [thread:$0]  %s224, 256, %s226, %s215, 128, 128, 8
        $region32: #{tpu_custom_call.1} parent=27 // pred_fallthru
          _
      $region28: #{tpu_custom_call.1} parent=5 // pred_fallthru
        _
      %p232 = scmp.le.s32.totalorder 1, %s22
      %p233 = scmp.lt.s32.totalorder %s22, 5
      %p234 = pnand %p232, %p233
      %p235 = pneg %p234
      // Predicated region
      $region33: #{tpu_custom_call.1} parent=5 // pred_check
        _
      $region34: #{tpu_custom_call.1} parent=5 // pred_check_branch
        %237 = sbr.rel (%p234) target = $region36
      $region35: #{tpu_custom_call.1} parent=5 // pred_region
        %s238 = ssub.s32 %s22, 1
        %s239 = sand.u32 %s35, 1
        %s240 = scalar_lea.sflag [#allocation3], %s239
        %s241 = sand.u32 %s35, 1
        %s242 = smul.addr %s241, 16
        %s243 = scalar_lea.vmem [#allocation2], %s242
        // Predicated region
        $region37: #{tpu_custom_call.1} parent=35 // pred_check
          %p244 = pneg %p48
        $region38: #{tpu_custom_call.1} parent=35 // pred_check_branch
          %246 = sbr.rel (%p244) target = $region40
        $region39: #{tpu_custom_call.1} parent=35 // pred_region
          %247 = dma.done %s240, 256
        $region40: #{tpu_custom_call.1} parent=35 // pred_fallthru
          _
        // Predicated region
        $region41: #{tpu_custom_call.1} parent=35 // pred_check
          %p248 = pneg %p69
        $region42: #{tpu_custom_call.1} parent=35 // pred_check_branch
          %250 = sbr.rel (%p248) target = $region44
        $region43: #{tpu_custom_call.1} parent=35 // pred_region
          %251 = dma.done [#allocation6], 4096
        $region44: #{tpu_custom_call.1} parent=35 // pred_fallthru
          _
        // Predicated region
        $region45: #{tpu_custom_call.1} parent=35 // pred_check
          %p252 = pneg %p111
        $region46: #{tpu_custom_call.1} parent=35 // pred_check_branch
          %254 = sbr.rel (%p252) target = $region48
        $region47: #{tpu_custom_call.1} parent=35 // pred_region
          %255 = dma.done [#allocation6], 4096
        $region48: #{tpu_custom_call.1} parent=35 // pred_fallthru
          _
        %s256 = sand.u32 %s35, 1
        %s257 = scalar_lea.sflag [#allocation3], %s256
        %s258 = sand.u32 %s35, 1
        %s259 = smul.addr %s258, 16
        %s260 = scalar_lea.vmem [#allocation2], %s259
        %p261 = pneg %p48
        %p262 = pneg %p45
        %p263 = pneg %p69
        %p264 = pneg %p66
        %p265 = pneg %p90
        %p266 = pneg %p87
        %p267 = pneg %p111
        %p268 = pneg %p108
        %p269 = pneg %p137
        %p270 = pneg %p134
        %s271 = sand.u32 %s124, 1
        %s272 = scalar_lea.sflag [#allocation4], %s271
        %s273 = sand.u32 %s124, 1
        %s274 = smul.addr %s273, 32
        %s275 = scalar_lea.vmem [#allocation8], %s274
        %p276 = pneg %p163
        %p277 = pneg %p160
        %s278 = sand.u32 %s150, 1
        %s279 = scalar_lea.sflag [#allocation10], %s278
        %s280 = sand.u32 %s150, 1
        %s281 = smul.addr %s280, 16
        %s282 = scalar_lea.vmem [#allocation9], %s281
        %s283 = smul.u32 2, %s27
        %s284 = smul.u32 2, %s27
        %s285 = smul.u32 2, %s27
        %v286 = vld [vmem:[%s243] sm:$0xff]
        %v287 = vld [vmem:[%s243 + $0x8] sm:$0xff]
        %v288 = vld [vmem:[#allocation5] sm:$0xff]
        %v289 = vld [vmem:[#allocation5 + $0x8] sm:$0xff]
        %v290 = vld [vmem:[#allocation5 + $0x10] sm:$0xff]
        %v291 = vld [vmem:[#allocation5 + $0x18] sm:$0xff]
        %v292 = vld [vmem:[#allocation5 + $0x20] sm:$0xff]
        %v293 = vld [vmem:[#allocation5 + $0x28] sm:$0xff]
        %v294 = vld [vmem:[#allocation5 + $0x30] sm:$0xff]
        %v295 = vld [vmem:[#allocation5 + $0x38] sm:$0xff]
        %v296 = vld [vmem:[#allocation5 + $0x40] sm:$0xff]
        %v297 = vld [vmem:[#allocation5 + $0x48] sm:$0xff]
        %v298 = vld [vmem:[#allocation5 + $0x50] sm:$0xff]
        %v299 = vld [vmem:[#allocation5 + $0x58] sm:$0xff]
        %v300 = vld [vmem:[#allocation5 + $0x60] sm:$0xff]
        %v301 = vld [vmem:[#allocation5 + $0x68] sm:$0xff]
        %v302 = vld [vmem:[#allocation5 + $0x70] sm:$0xff]
        %v303 = vld [vmem:[#allocation5 + $0x78] sm:$0xff]
        %v304 = vld [vmem:[#allocation5 + $0x80] sm:$0xff]
        %v305 = vld [vmem:[#allocation5 + $0x88] sm:$0xff]
        %v306 = vld [vmem:[#allocation5 + $0x90] sm:$0xff]
        %v307 = vld [vmem:[#allocation5 + $0x98] sm:$0xff]
        %v308 = vld [vmem:[#allocation5 + $0xa0] sm:$0xff]
        %v309 = vld [vmem:[#allocation5 + $0xa8] sm:$0xff]
        %v310 = vld [vmem:[#allocation5 + $0xb0] sm:$0xff]
        %v311 = vld [vmem:[#allocation5 + $0xb8] sm:$0xff]
        %v312 = vld [vmem:[#allocation5 + $0xc0] sm:$0xff]
        %v313 = vld [vmem:[#allocation5 + $0xc8] sm:$0xff]
        %v314 = vld [vmem:[#allocation5 + $0xd0] sm:$0xff]
        %v315 = vld [vmem:[#allocation5 + $0xd8] sm:$0xff]
        %v316 = vld [vmem:[#allocation5 + $0xe0] sm:$0xff]
        %v317 = vld [vmem:[#allocation5 + $0xe8] sm:$0xff]
        %v318 = vld [vmem:[#allocation5 + $0xf0] sm:$0xff]
        %v319 = vld [vmem:[#allocation5 + $0xf8] sm:$0xff]
        %v320 = vld [vmem:[%s2] sm:$0x3]
        %v322 = vlaneseq
        %v323 = vshrl.u32 %v322, 7
        %v324 = vsub.s32 0, %v323
        %v325 = vrot.slane %v320, %v324
        %v326 = vlaneseq
        %v327 = vshrl.u32 %v326, 7
        %v328 = vsub.s32 1, %v327
        %v329 = vrot.slane %v320, %v328
        %332 = vmatprep.subr.mxu0 %v289
        %333 = vmatpush1.msra.mxu0 %v288
        %334 = vmatprep.subr.mxu0 %v291
        %335 = vmatpush1.msra.mxu0 %v290
        %336 = vmatprep.subr.mxu0 %v293
        %337 = vmatpush1.msra.mxu0 %v292
        %338 = vmatprep.subr.mxu0 %v295
        %339 = vmatpush1.msra.mxu0 %v294
        %340 = vmatprep.subr.mxu0 %v297
        %341 = vmatpush1.msra.mxu0 %v296
        %342 = vmatprep.subr.mxu0 %v299
        %343 = vmatpush1.msra.mxu0 %v298
        %344 = vmatprep.subr.mxu0 %v301
        %345 = vmatpush1.msra.mxu0 %v300
        %346 = vmatprep.subr.mxu0 %v303
        %347 = vmatpush1.msra.mxu0 %v302
        %348 = vmatprep.subr.mxu0 %v305
        %349 = vmatpush1.msra.mxu0 %v304
        %350 = vmatprep.subr.mxu0 %v307
        %351 = vmatpush1.msra.mxu0 %v306
        %352 = vmatprep.subr.mxu0 %v309
        %353 = vmatpush1.msra.mxu0 %v308
        %354 = vmatprep.subr.mxu0 %v311
        %355 = vmatpush1.msra.mxu0 %v310
        %356 = vmatprep.subr.mxu0 %v313
        %357 = vmatpush1.msra.mxu0 %v312
        %358 = vmatprep.subr.mxu0 %v315
        %359 = vmatpush1.msra.mxu0 %v314
        %360 = vmatprep.subr.mxu0 %v317
        %361 = vmatpush1.msra.mxu0 %v316
        %362 = vmatprep.subr.mxu0 %v319
        %363 = vmatpush1.msra.mxu0 %v318
        %364 = vmatprep.subr.mxu0 0.0
        %365 = vmatpush1.msra.mxu0 0.0
        %366 = vmatprep.subr.mxu0 0.0
        %367 = vmatpush1.msra.mxu0 0.0
        %368 = vmatprep.subr.mxu0 0.0
        %369 = vmatpush1.msra.mxu0 0.0
        %370 = vmatprep.subr.mxu0 0.0
        %371 = vmatpush1.msra.mxu0 0.0
        %372 = vmatprep.subr.mxu0 0.0
        %373 = vmatpush1.msra.mxu0 0.0
        %374 = vmatprep.subr.mxu0 0.0
        %375 = vmatpush1.msra.mxu0 0.0
        %376 = vmatprep.subr.mxu0 0.0
        %377 = vmatpush1.msra.mxu0 0.0
        %378 = vmatprep.subr.mxu0 0.0
        %379 = vmatpush1.msra.mxu0 0.0
        %380 = vmatprep.subr.mxu0 0.0
        %381 = vmatpush1.msra.mxu0 0.0
        %382 = vmatprep.subr.mxu0 0.0
        %383 = vmatpush1.msra.mxu0 0.0
        %384 = vmatprep.subr.mxu0 0.0
        %385 = vmatpush1.msra.mxu0 0.0
        %386 = vmatprep.subr.mxu0 0.0
        %387 = vmatpush1.msra.mxu0 0.0
        %388 = vmatprep.subr.mxu0 0.0
        %389 = vmatpush1.msra.mxu0 0.0
        %390 = vmatprep.subr.mxu0 0.0
        %391 = vmatpush1.msra.mxu0 0.0
        %392 = vmatprep.subr.mxu0 0.0
        %393 = vmatpush1.msra.mxu0 0.0
        %394 = vmatprep.subr.mxu0 0.0
        %395 = vmatpush1.msra.mxu0 0.0
        %396 = vmatprep.mubr.f32.mxu0 0.0
        %397 = vmatmul.mubr.f32.gmra.mrb[0].mxu0 %v286
        %v398 = vpop.f32.mrb[0].mxu0
        %v399 = vadd.f32 %v325, %v398
        %v400 = vpop.f32.mrb[0].mxu0
        %v401 = vadd.f32 %v329, %v400
        %402 = vmatprep.mubr.f32.mxu0 0.0
        %403 = vmatmul.mubr.f32.gmra.mrb[0].mxu0 %v287
        %v404 = vpop.f32.mrb[0].mxu0
        %v405 = vadd.f32 %v325, %v404
        %v406 = vpop.f32.mrb[0].mxu0
        %v407 = vadd.f32 %v329, %v406
        %408 = vdwg.mxu0
        %v409 = vmax.f32 %v399, 0.0
        %v410 = vmax.f32 %v401, 0.0
        %v411 = vmax.f32 %v405, 0.0
        %v412 = vmax.f32 %v407, 0.0
        %v413 = vlaneseq
        %v414 = vand.u32 %v413, 127
        %v415 = vadd.s32 %v414, 128
        %v416 = vsub.s32 255, %v414
        %v417 = vsub.s32 255, %v415
        %v422 = vand.u32 %v409, 4294967040
        %v423 = vand.u32 %v410, 4294967040
        %v424 = vand.u32 %v411, 4294967040
        %v425 = vand.u32 %v412, 4294967040
        %v426 = vor.u32 %v422, %v416
        %v427 = vor.u32 %v423, %v417
        %v428 = vor.u32 %v424, %v416
        %v429 = vor.u32 %v425, %v417
        %vm430 = vcmp.gt.s32.totalorder %v426, %v427
        %v431 = vsel %vm430, %v426, %v427
        %v432 = vand.u32 %v431, 65535
        %v433 = vshra.s32 %v431, 16
        %v434 = vcvt.s32.f32 %v432
        %v435 = vcvt.s32.f32 %v433
        %436 = vmax.xlane.f32.xlu0 %v435
        %v437 = vpop.xlane.xlu0 %436
        %vm438 = vcmp.eq.f32.partialorder %v435, %v437
        %v439 = vsel %vm438, %v434, -inf
        %440 = vmax.xlane.f32.xlu0 %v439
        %v441 = vpop.xlane.xlu0 %440
        %v442 = vcvt.f32.s32 %v441
        %v443 = vcvt.f32.s32 %v437
        %v444 = vshll.u32 %v443, 16
        %v445 = vadd.s32 %v444, %v442
        %vm446 = vcmp.gt.s32.totalorder %v428, %v429
        %v447 = vsel %vm446, %v428, %v429
        %v448 = vand.u32 %v447, 65535
        %v449 = vshra.s32 %v447, 16
        %v450 = vcvt.s32.f32 %v448
        %v451 = vcvt.s32.f32 %v449
        %452 = vmax.xlane.f32.xlu0 %v451
        %v453 = vpop.xlane.xlu0 %452
        %vm454 = vcmp.eq.f32.partialorder %v451, %v453
        %v455 = vsel %vm454, %v450, -inf
        %456 = vmax.xlane.f32.xlu0 %v455
        %v457 = vpop.xlane.xlu0 %456
        %v458 = vcvt.f32.s32 %v457
        %v459 = vcvt.f32.s32 %v453
        %v460 = vshll.u32 %v459, 16
        %v461 = vadd.s32 %v460, %v458
        %vm462 = vcmp.eq.s32.totalorder %v426, %v445
        %vm463 = vcmp.eq.s32.totalorder %v427, %v445
        %vm464 = vcmp.eq.s32.totalorder %v428, %v461
        %vm465 = vcmp.eq.s32.totalorder %v429, %v461
        %v466 = vsel %vm462, 4294967295, %v426
        %v467 = vsel %vm463, 4294967295, %v427
        %v468 = vsel %vm464, 4294967295, %v428
        %v469 = vsel %vm465, 4294967295, %v429
        %vm470 = vcmp.gt.s32.totalorder %v466, %v467
        %v471 = vsel %vm470, %v466, %v467
        %v472 = vand.u32 %v471, 65535
        %v473 = vshra.s32 %v471, 16
        %v474 = vcvt.s32.f32 %v472
        %v475 = vcvt.s32.f32 %v473
        %476 = vmax.xlane.f32.xlu0 %v475
        %v477 = vpop.xlane.xlu0 %476
        %vm478 = vcmp.eq.f32.partialorder %v475, %v477
        %v479 = vsel %vm478, %v474, -inf
        %480 = vmax.xlane.f32.xlu0 %v479
        %v481 = vpop.xlane.xlu0 %480
        %v482 = vcvt.f32.s32 %v481
        %v483 = vcvt.f32.s32 %v477
        %v484 = vshll.u32 %v483, 16
        %v485 = vadd.s32 %v484, %v482
        %vm486 = vcmp.gt.s32.totalorder %v468, %v469
        %v487 = vsel %vm486, %v468, %v469
        %v488 = vand.u32 %v487, 65535
        %v489 = vshra.s32 %v487, 16
        %v490 = vcvt.s32.f32 %v488
        %v491 = vcvt.s32.f32 %v489
        %492 = vmax.xlane.f32.xlu0 %v491
        %v493 = vpop.xlane.xlu0 %492
        %vm494 = vcmp.eq.f32.partialorder %v491, %v493
        %v495 = vsel %vm494, %v490, -inf
        %496 = vmax.xlane.f32.xlu0 %v495
        %v497 = vpop.xlane.xlu0 %496
        %v498 = vcvt.f32.s32 %v497
        %v499 = vcvt.f32.s32 %v493
        %v500 = vshll.u32 %v499, 16
        %v501 = vadd.s32 %v500, %v498
        %vm502 = vcmp.eq.s32.totalorder %v466, %v485
        %vm503 = vcmp.eq.s32.totalorder %v467, %v485
        %vm504 = vcmp.eq.s32.totalorder %v468, %v501
        %vm505 = vcmp.eq.s32.totalorder %v469, %v501
        %v506 = vsel %vm502, 4294967295, %v466
        %v507 = vsel %vm503, 4294967295, %v467
        %v508 = vsel %vm504, 4294967295, %v468
        %v509 = vsel %vm505, 4294967295, %v469
        %vm510 = vcmp.gt.s32.totalorder %v506, %v507
        %v511 = vsel %vm510, %v506, %v507
        %v512 = vand.u32 %v511, 65535
        %v513 = vshra.s32 %v511, 16
        %v514 = vcvt.s32.f32 %v512
        %v515 = vcvt.s32.f32 %v513
        %516 = vmax.xlane.f32.xlu0 %v515
        %v517 = vpop.xlane.xlu0 %516
        %vm518 = vcmp.eq.f32.partialorder %v515, %v517
        %v519 = vsel %vm518, %v514, -inf
        %520 = vmax.xlane.f32.xlu0 %v519
        %v521 = vpop.xlane.xlu0 %520
        %v522 = vcvt.f32.s32 %v521
        %v523 = vcvt.f32.s32 %v517
        %v524 = vshll.u32 %v523, 16
        %v525 = vadd.s32 %v524, %v522
        %vm526 = vcmp.gt.s32.totalorder %v508, %v509
        %v527 = vsel %vm526, %v508, %v509
        %v528 = vand.u32 %v527, 65535
        %v529 = vshra.s32 %v527, 16
        %v530 = vcvt.s32.f32 %v528
        %v531 = vcvt.s32.f32 %v529
        %532 = vmax.xlane.f32.xlu0 %v531
        %v533 = vpop.xlane.xlu0 %532
        %vm534 = vcmp.eq.f32.partialorder %v531, %v533
        %v535 = vsel %vm534, %v530, -inf
        %536 = vmax.xlane.f32.xlu0 %v535
        %v537 = vpop.xlane.xlu0 %536
        %v538 = vcvt.f32.s32 %v537
        %v539 = vcvt.f32.s32 %v533
        %v540 = vshll.u32 %v539, 16
        %v541 = vadd.s32 %v540, %v538
        %vm542 = vcmp.eq.s32.totalorder %v506, %v525
        %vm543 = vcmp.eq.s32.totalorder %v507, %v525
        %vm544 = vcmp.eq.s32.totalorder %v508, %v541
        %vm545 = vcmp.eq.s32.totalorder %v509, %v541
        %v546 = vsel %vm542, 4294967295, %v506
        %v547 = vsel %vm543, 4294967295, %v507
        %v548 = vsel %vm544, 4294967295, %v508
        %v549 = vsel %vm545, 4294967295, %v509
        %vm550 = vcmp.gt.s32.totalorder %v546, %v547
        %v551 = vsel %vm550, %v546, %v547
        %v552 = vand.u32 %v551, 65535
        %v553 = vshra.s32 %v551, 16
        %v554 = vcvt.s32.f32 %v552
        %v555 = vcvt.s32.f32 %v553
        %556 = vmax.xlane.f32.xlu0 %v555
        %v557 = vpop.xlane.xlu0 %556
        %vm558 = vcmp.eq.f32.partialorder %v555, %v557
        %v559 = vsel %vm558, %v554, -inf
        %560 = vmax.xlane.f32.xlu0 %v559
        %v561 = vpop.xlane.xlu0 %560
        %v562 = vcvt.f32.s32 %v561
        %v563 = vcvt.f32.s32 %v557
        %v564 = vshll.u32 %v563, 16
        %v565 = vadd.s32 %v564, %v562
        %vm566 = vcmp.gt.s32.totalorder %v548, %v549
        %v567 = vsel %vm566, %v548, %v549
        %v568 = vand.u32 %v567, 65535
        %v569 = vshra.s32 %v567, 16
        %v570 = vcvt.s32.f32 %v568
        %v571 = vcvt.s32.f32 %v569
        %572 = vmax.xlane.f32.xlu0 %v571
        %v573 = vpop.xlane.xlu0 %572
        %vm574 = vcmp.eq.f32.partialorder %v571, %v573
        %v575 = vsel %vm574, %v570, -inf
        %576 = vmax.xlane.f32.xlu0 %v575
        %v577 = vpop.xlane.xlu0 %576
        %v578 = vcvt.f32.s32 %v577
        %v579 = vcvt.f32.s32 %v573
        %v580 = vshll.u32 %v579, 16
        %v581 = vadd.s32 %v580, %v578
        %vm582 = vcmp.eq.s32.totalorder %v546, %v565
        %vm583 = vcmp.eq.s32.totalorder %v547, %v565
        %vm584 = vcmp.eq.s32.totalorder %v548, %v581
        %vm585 = vcmp.eq.s32.totalorder %v549, %v581
        %v586 = vsel %vm582, 4294967295, %v546
        %v587 = vsel %vm583, 4294967295, %v547
        %v588 = vsel %vm584, 4294967295, %v548
        %v589 = vsel %vm585, 4294967295, %v549
        %vm590 = vcmp.gt.s32.totalorder %v586, %v587
        %v591 = vsel %vm590, %v586, %v587
        %v592 = vand.u32 %v591, 65535
        %v593 = vshra.s32 %v591, 16
        %v594 = vcvt.s32.f32 %v592
        %v595 = vcvt.s32.f32 %v593
        %596 = vmax.xlane.f32.xlu0 %v595
        %v597 = vpop.xlane.xlu0 %596
        %vm598 = vcmp.eq.f32.partialorder %v595, %v597
        %v599 = vsel %vm598, %v594, -inf
        %600 = vmax.xlane.f32.xlu0 %v599
        %v601 = vpop.xlane.xlu0 %600
        %v602 = vcvt.f32.s32 %v601
        %v603 = vcvt.f32.s32 %v597
        %v604 = vshll.u32 %v603, 16
        %v605 = vadd.s32 %v604, %v602
        %vm606 = vcmp.gt.s32.totalorder %v588, %v589
        %v607 = vsel %vm606, %v588, %v589
        %v608 = vand.u32 %v607, 65535
        %v609 = vshra.s32 %v607, 16
        %v610 = vcvt.s32.f32 %v608
        %v611 = vcvt.s32.f32 %v609
        %612 = vmax.xlane.f32.xlu0 %v611
        %v613 = vpop.xlane.xlu0 %612
        %vm614 = vcmp.eq.f32.partialorder %v611, %v613
        %v615 = vsel %vm614, %v610, -inf
        %616 = vmax.xlane.f32.xlu0 %v615
        %v617 = vpop.xlane.xlu0 %616
        %v618 = vcvt.f32.s32 %v617
        %v619 = vcvt.f32.s32 %v613
        %v620 = vshll.u32 %v619, 16
        %v621 = vadd.s32 %v620, %v618
        %vm622 = vcmp.eq.s32.totalorder %v586, %v605
        %vm623 = vcmp.eq.s32.totalorder %v587, %v605
        %vm624 = vcmp.eq.s32.totalorder %v588, %v621
        %vm625 = vcmp.eq.s32.totalorder %v589, %v621
        %v626 = vsel %vm622, 4294967295, %v586
        %v627 = vsel %vm623, 4294967295, %v587
        %v628 = vsel %vm624, 4294967295, %v588
        %v629 = vsel %vm625, 4294967295, %v589
        %vm630 = vcmp.gt.s32.totalorder %v626, %v627
        %v631 = vsel %vm630, %v626, %v627
        %v632 = vand.u32 %v631, 65535
        %v633 = vshra.s32 %v631, 16
        %v634 = vcvt.s32.f32 %v632
        %v635 = vcvt.s32.f32 %v633
        %636 = vmax.xlane.f32.xlu0 %v635
        %v637 = vpop.xlane.xlu0 %636
        %vm638 = vcmp.eq.f32.partialorder %v635, %v637
        %v639 = vsel %vm638, %v634, -inf
        %640 = vmax.xlane.f32.xlu0 %v639
        %v641 = vpop.xlane.xlu0 %640
        %v642 = vcvt.f32.s32 %v641
        %v643 = vcvt.f32.s32 %v637
        %v644 = vshll.u32 %v643, 16
        %v645 = vadd.s32 %v644, %v642
        %vm646 = vcmp.gt.s32.totalorder %v628, %v629
        %v647 = vsel %vm646, %v628, %v629
        %v648 = vand.u32 %v647, 65535
        %v649 = vshra.s32 %v647, 16
        %v650 = vcvt.s32.f32 %v648
        %v651 = vcvt.s32.f32 %v649
        %652 = vmax.xlane.f32.xlu0 %v651
        %v653 = vpop.xlane.xlu0 %652
        %vm654 = vcmp.eq.f32.partialorder %v651, %v653
        %v655 = vsel %vm654, %v650, -inf
        %656 = vmax.xlane.f32.xlu0 %v655
        %v657 = vpop.xlane.xlu0 %656
        %v658 = vcvt.f32.s32 %v657
        %v659 = vcvt.f32.s32 %v653
        %v660 = vshll.u32 %v659, 16
        %v661 = vadd.s32 %v660, %v658
        %vm662 = vcmp.eq.s32.totalorder %v626, %v645
        %vm663 = vcmp.eq.s32.totalorder %v627, %v645
        %vm664 = vcmp.eq.s32.totalorder %v628, %v661
        %vm665 = vcmp.eq.s32.totalorder %v629, %v661
        %v666 = vsel %vm662, 4294967295, %v626
        %v667 = vsel %vm663, 4294967295, %v627
        %v668 = vsel %vm664, 4294967295, %v628
        %v669 = vsel %vm665, 4294967295, %v629
        %vm670 = vcmp.gt.s32.totalorder %v666, %v667
        %v671 = vsel %vm670, %v666, %v667
        %v672 = vand.u32 %v671, 65535
        %v673 = vshra.s32 %v671, 16
        %v674 = vcvt.s32.f32 %v672
        %v675 = vcvt.s32.f32 %v673
        %676 = vmax.xlane.f32.xlu0 %v675
        %v677 = vpop.xlane.xlu0 %676
        %vm678 = vcmp.eq.f32.partialorder %v675, %v677
        %v679 = vsel %vm678, %v674, -inf
        %680 = vmax.xlane.f32.xlu0 %v679
        %v681 = vpop.xlane.xlu0 %680
        %v682 = vcvt.f32.s32 %v681
        %v683 = vcvt.f32.s32 %v677
        %v684 = vshll.u32 %v683, 16
        %v685 = vadd.s32 %v684, %v682
        %vm686 = vcmp.gt.s32.totalorder %v668, %v669
        %v687 = vsel %vm686, %v668, %v669
        %v688 = vand.u32 %v687, 65535
        %v689 = vshra.s32 %v687, 16
        %v690 = vcvt.s32.f32 %v688
        %v691 = vcvt.s32.f32 %v689
        %692 = vmax.xlane.f32.xlu0 %v691
        %v693 = vpop.xlane.xlu0 %692
        %vm694 = vcmp.eq.f32.partialorder %v691, %v693
        %v695 = vsel %vm694, %v690, -inf
        %696 = vmax.xlane.f32.xlu0 %v695
        %v697 = vpop.xlane.xlu0 %696
        %v698 = vcvt.f32.s32 %v697
        %v699 = vcvt.f32.s32 %v693
        %v700 = vshll.u32 %v699, 16
        %v701 = vadd.s32 %v700, %v698
        %vm702 = vcmp.eq.s32.totalorder %v666, %v685
        %vm703 = vcmp.eq.s32.totalorder %v667, %v685
        %vm704 = vcmp.eq.s32.totalorder %v668, %v701
        %vm705 = vcmp.eq.s32.totalorder %v669, %v701
        %v706 = vsel %vm702, 4294967295, %v666
        %v707 = vsel %vm703, 4294967295, %v667
        %v708 = vsel %vm704, 4294967295, %v668
        %v709 = vsel %vm705, 4294967295, %v669
        %vm710 = vcmp.gt.s32.totalorder %v706, %v707
        %v711 = vsel %vm710, %v706, %v707
        %v712 = vand.u32 %v711, 65535
        %v713 = vshra.s32 %v711, 16
        %v714 = vcvt.s32.f32 %v712
        %v715 = vcvt.s32.f32 %v713
        %716 = vmax.xlane.f32.xlu0 %v715
        %v717 = vpop.xlane.xlu0 %716
        %vm718 = vcmp.eq.f32.partialorder %v715, %v717
        %v719 = vsel %vm718, %v714, -inf
        %720 = vmax.xlane.f32.xlu0 %v719
        %v721 = vpop.xlane.xlu0 %720
        %v722 = vcvt.f32.s32 %v721
        %v723 = vcvt.f32.s32 %v717
        %v724 = vshll.u32 %v723, 16
        %v725 = vadd.s32 %v724, %v722
        %vm726 = vcmp.gt.s32.totalorder %v708, %v709
        %v727 = vsel %vm726, %v708, %v709
        %v728 = vand.u32 %v727, 65535
        %v729 = vshra.s32 %v727, 16
        %v730 = vcvt.s32.f32 %v728
        %v731 = vcvt.s32.f32 %v729
        %732 = vmax.xlane.f32.xlu0 %v731
        %v733 = vpop.xlane.xlu0 %732
        %vm734 = vcmp.eq.f32.partialorder %v731, %v733
        %v735 = vsel %vm734, %v730, -inf
        %736 = vmax.xlane.f32.xlu0 %v735
        %v737 = vpop.xlane.xlu0 %736
        %v738 = vcvt.f32.s32 %v737
        %v739 = vcvt.f32.s32 %v733
        %v740 = vshll.u32 %v739, 16
        %v741 = vadd.s32 %v740, %v738
        %vm742 = vcmp.eq.s32.totalorder %v706, %v725
        %vm743 = vcmp.eq.s32.totalorder %v707, %v725
        %vm744 = vcmp.eq.s32.totalorder %v708, %v741
        %vm745 = vcmp.eq.s32.totalorder %v709, %v741
        %v746 = vsel %vm742, 4294967295, %v706
        %v747 = vsel %vm743, 4294967295, %v707
        %v748 = vsel %vm744, 4294967295, %v708
        %v749 = vsel %vm745, 4294967295, %v709
        %vm750 = vcmp.lt.s32.totalorder %v746, 0
        %vm751 = vcmp.lt.s32.totalorder %v747, 0
        %vm752 = vcmp.lt.s32.totalorder %v748, 0
        %vm753 = vcmp.lt.s32.totalorder %v749, 0
        %v754 = vsel %vm750, %v409, 0.0
        %v755 = vsel %vm751, %v410, 0.0
        %v756 = vsel %vm752, %v411, 0.0
        %v757 = vsel %vm753, %v412, 0.0
        %758 = vst [vmem:[%s275] sm:$0xff] %v754
        %759 = vst [vmem:[%s275 + $0x8] sm:$0xff] %v755
        %760 = vst [vmem:[%s275 + $0x10] sm:$0xff] %v756
        %761 = vst [vmem:[%s275 + $0x18] sm:$0xff] %v757
        %v762 = vld [vmem:[#allocation7] sm:$0xff]
        %v763 = vld [vmem:[#allocation7 + $0x8] sm:$0xff]
        %v764 = vld [vmem:[#allocation7 + $0x10] sm:$0xff]
        %v765 = vld [vmem:[#allocation7 + $0x18] sm:$0xff]
        %v766 = vld [vmem:[#allocation7 + $0x20] sm:$0xff]
        %v767 = vld [vmem:[#allocation7 + $0x28] sm:$0xff]
        %v768 = vld [vmem:[#allocation7 + $0x30] sm:$0xff]
        %v769 = vld [vmem:[#allocation7 + $0x38] sm:$0xff]
        %v770 = vld [vmem:[#allocation7 + $0x40] sm:$0xff]
        %v771 = vld [vmem:[#allocation7 + $0x48] sm:$0xff]
        %v772 = vld [vmem:[#allocation7 + $0x50] sm:$0xff]
        %v773 = vld [vmem:[#allocation7 + $0x58] sm:$0xff]
        %v774 = vld [vmem:[#allocation7 + $0x60] sm:$0xff]
        %v775 = vld [vmem:[#allocation7 + $0x68] sm:$0xff]
        %v776 = vld [vmem:[#allocation7 + $0x70] sm:$0xff]
        %v777 = vld [vmem:[#allocation7 + $0x78] sm:$0xff]
        %v778 = vld [vmem:[#allocation7 + $0x80] sm:$0xff]
        %v779 = vld [vmem:[#allocation7 + $0x88] sm:$0xff]
        %v780 = vld [vmem:[#allocation7 + $0x90] sm:$0xff]
        %v781 = vld [vmem:[#allocation7 + $0x98] sm:$0xff]
        %v782 = vld [vmem:[#allocation7 + $0xa0] sm:$0xff]
        %v783 = vld [vmem:[#allocation7 + $0xa8] sm:$0xff]
        %v784 = vld [vmem:[#allocation7 + $0xb0] sm:$0xff]
        %v785 = vld [vmem:[#allocation7 + $0xb8] sm:$0xff]
        %v786 = vld [vmem:[#allocation7 + $0xc0] sm:$0xff]
        %v787 = vld [vmem:[#allocation7 + $0xc8] sm:$0xff]
        %v788 = vld [vmem:[#allocation7 + $0xd0] sm:$0xff]
        %v789 = vld [vmem:[#allocation7 + $0xd8] sm:$0xff]
        %v790 = vld [vmem:[#allocation7 + $0xe0] sm:$0xff]
        %v791 = vld [vmem:[#allocation7 + $0xe8] sm:$0xff]
        %v792 = vld [vmem:[#allocation7 + $0xf0] sm:$0xff]
        %v793 = vld [vmem:[#allocation7 + $0xf8] sm:$0xff]
        %794 = vmatprep.subr.mxu0 0.0
        %795 = vmatpush1.msra.mxu0 %v762
        %796 = vmatprep.subr.mxu0 0.0
        %797 = vmatpush1.msra.mxu0 %v763
        %798 = vmatprep.subr.mxu0 0.0
        %799 = vmatpush1.msra.mxu0 %v764
        %800 = vmatprep.subr.mxu0 0.0
        %801 = vmatpush1.msra.mxu0 %v765
        %802 = vmatprep.subr.mxu0 0.0
        %803 = vmatpush1.msra.mxu0 %v766
        %804 = vmatprep.subr.mxu0 0.0
        %805 = vmatpush1.msra.mxu0 %v767
        %806 = vmatprep.subr.mxu0 0.0
        %807 = vmatpush1.msra.mxu0 %v768
        %808 = vmatprep.subr.mxu0 0.0
        %809 = vmatpush1.msra.mxu0 %v769
        %810 = vmatprep.subr.mxu0 0.0
        %811 = vmatpush1.msra.mxu0 %v770
        %812 = vmatprep.subr.mxu0 0.0
        %813 = vmatpush1.msra.mxu0 %v771
        %814 = vmatprep.subr.mxu0 0.0
        %815 = vmatpush1.msra.mxu0 %v772
        %816 = vmatprep.subr.mxu0 0.0
        %817 = vmatpush1.msra.mxu0 %v773
        %818 = vmatprep.subr.mxu0 0.0
        %819 = vmatpush1.msra.mxu0 %v774
        %820 = vmatprep.subr.mxu0 0.0
        %821 = vmatpush1.msra.mxu0 %v775
        %822 = vmatprep.subr.mxu0 0.0
        %823 = vmatpush1.msra.mxu0 %v776
        %824 = vmatprep.subr.mxu0 0.0
        %825 = vmatpush1.msra.mxu0 %v777
        %826 = vmatprep.subr.mxu0 0.0
        %827 = vmatpush1.msra.mxu0 %v778
        %828 = vmatprep.subr.mxu0 0.0
        %829 = vmatpush1.msra.mxu0 %v779
        %830 = vmatprep.subr.mxu0 0.0
        %831 = vmatpush1.msra.mxu0 %v780
        %832 = vmatprep.subr.mxu0 0.0
        %833 = vmatpush1.msra.mxu0 %v781
        %834 = vmatprep.subr.mxu0 0.0
        %835 = vmatpush1.msra.mxu0 %v782
        %836 = vmatprep.subr.mxu0 0.0
        %837 = vmatpush1.msra.mxu0 %v783
        %838 = vmatprep.subr.mxu0 0.0
        %839 = vmatpush1.msra.mxu0 %v784
        %840 = vmatprep.subr.mxu0 0.0
        %841 = vmatpush1.msra.mxu0 %v785
        %842 = vmatprep.subr.mxu0 0.0
        %843 = vmatpush1.msra.mxu0 %v786
        %844 = vmatprep.subr.mxu0 0.0
        %845 = vmatpush1.msra.mxu0 %v787
        %846 = vmatprep.subr.mxu0 0.0
        %847 = vmatpush1.msra.mxu0 %v788
        %848 = vmatprep.subr.mxu0 0.0
        %849 = vmatpush1.msra.mxu0 %v789
        %850 = vmatprep.subr.mxu0 0.0
        %851 = vmatpush1.msra.mxu0 %v790
        %852 = vmatprep.subr.mxu0 0.0
        %853 = vmatpush1.msra.mxu0 %v791
        %854 = vmatprep.subr.mxu0 0.0
        %855 = vmatpush1.msra.mxu0 %v792
        %856 = vmatprep.subr.mxu0 0.0
        %857 = vmatpush1.msra.mxu0 %v793
        %858 = vmatprep.mubr.f32.mxu0 %v755
        %859 = vmatmul.mubr.f32.gmra.mrb[0].mxu0 %v754
        %v860 = vpop.f32.mrb[0].mxu0
        %v861 = vadd.f32 0.0, %v860
        %v862 = vpop.f32.mrb[0].mxu0
        %863 = vmatprep.mubr.f32.mxu0 %v757
        %864 = vmatmul.mubr.f32.gmra.mrb[0].mxu0 %v756
        %v865 = vpop.f32.mrb[0].mxu0
        %v866 = vadd.f32 0.0, %v865
        %v867 = vpop.f32.mrb[0].mxu0
        %868 = vdwg.mxu0
        %869 = vst [vmem:[%s282] sm:$0xff] %v861
        %870 = vst [vmem:[%s282 + $0x8] sm:$0xff] %v866
        %s871 = sand.u32 %s124, 1
        %s872 = scalar_lea.sflag [#allocation4], %s871
        %s873 = sand.u32 %s124, 1
        %s874 = smul.addr %s873, 32
        %s875 = scalar_lea.vmem [#allocation8], %s874
        %s876 = sand.u32 %s150, 1
        %s877 = scalar_lea.sflag [#allocation10], %s876
        %s878 = sand.u32 %s150, 1
        %s879 = smul.addr %s878, 16
        %s880 = scalar_lea.vmem [#allocation9], %s879
        // Predicated region
        $region49: #{tpu_custom_call.1} parent=35 // pred_check
          %p881 = pneg %p134
        $region50: #{tpu_custom_call.1} parent=35 // pred_check_branch
          %883 = sbr.rel (%p881) target = $region52
        $region51: #{tpu_custom_call.1} parent=35 // pred_region
          %s884 = smul.u32 2, %s27
          %s886 = ssub.s32 512, 512
          %887 = vsyncadd %s872, %s886
          %s888 = smul.addr %s884, 2
          %s889 = smul.addr %s888, 128
          %s890 = scalar_lea.hbm %s4, %s889
          %s891 = sshll.u32 %s875, 4
          %s892 = int_to_ptr.vmem [resolvable:$true] %s891
          %897 = dma.vmem_to_hbm [thread:$0]  %s892, 512, %s890, %s872, 256, 256, 16
        $region52: #{tpu_custom_call.1} parent=35 // pred_fallthru
          _
        // Predicated region
        $region53: #{tpu_custom_call.1} parent=35 // pred_check
          %p898 = pneg %p160
        $region54: #{tpu_custom_call.1} parent=35 // pred_check_branch
          %900 = sbr.rel (%p898) target = $region56
        $region55: #{tpu_custom_call.1} parent=35 // pred_region
          %s901 = smul.u32 2, %s27
          %s903 = ssub.s32 256, 256
          %904 = vsyncadd %s877, %s903
          %s905 = smul.addr %s901, 128
          %s906 = scalar_lea.hbm %s5, %s905
          %s907 = sshll.u32 %s880, 4
          %s908 = int_to_ptr.vmem [resolvable:$true] %s907
          %913 = dma.vmem_to_hbm [thread:$0]  %s908, 256, %s906, %s877, 128, 128, 8
        $region56: #{tpu_custom_call.1} parent=35 // pred_fallthru
          _
      $region36: #{tpu_custom_call.1} parent=5 // pred_fallthru
        _
      %p914 = scmp.le.s32.totalorder 2, %s22
      // Predicated region
      $region57: #{tpu_custom_call.1} parent=5 // pred_check
        %p915 = pneg %p914
      $region58: #{tpu_custom_call.1} parent=5 // pred_check_branch
        %917 = sbr.rel (%p915) target = $region60
      $region59: #{tpu_custom_call.1} parent=5 // pred_region
        %s918 = ssub.s32 %s22, 2
        // Predicated region
        $region61: #{tpu_custom_call.1} parent=59 // pred_check
          %p919 = pneg %p140
        $region62: #{tpu_custom_call.1} parent=59 // pred_check_branch
          %921 = sbr.rel (%p919) target = $region64
        $region63: #{tpu_custom_call.1} parent=59 // pred_region
          %s922 = sand.u32 %s125, 1
          %s923 = scalar_lea.sflag [#allocation4], %s922
          %s924 = sand.u32 %s125, 1
          %s925 = smul.addr %s924, 32
          %s926 = scalar_lea.vmem [#allocation8], %s925
          %927 = dma.done %s923, 512
        $region64: #{tpu_custom_call.1} parent=59 // pred_fallthru
          _
        // Predicated region
        $region65: #{tpu_custom_call.1} parent=59 // pred_check
          %p928 = pneg %p166
        $region66: #{tpu_custom_call.1} parent=59 // pred_check_branch
          %930 = sbr.rel (%p928) target = $region68
        $region67: #{tpu_custom_call.1} parent=59 // pred_region
          %s931 = sand.u32 %s151, 1
          %s932 = scalar_lea.sflag [#allocation10], %s931
          %s933 = sand.u32 %s151, 1
          %s934 = smul.addr %s933, 16
          %s935 = scalar_lea.vmem [#allocation9], %s934
          %936 = dma.done %s932, 256
        $region68: #{tpu_custom_call.1} parent=59 // pred_fallthru
          _
      $region60: #{tpu_custom_call.1} parent=5 // pred_fallthru
        _
    $region6: #{tpu_custom_call.1} parent=1 // loop_footer
      %s26 = sadd.s32 1, %s22
    $region7: #{tpu_custom_call.1} parent=1 // loop_footer_branch
      %21 = sbr.rel target = $region3
    $region8: #{tpu_custom_call.1} parent=1 // loop_exit
      _
    %937 = vsyncpa [#allocation3], 1
    %s938 = scalar_lea.sflag [#allocation3], 1
    %939 = vsyncpa %s938, 1
    %940 = vsyncpa [#allocation6], 1
    %941 = vsyncpa [#allocation4], 1
    %s942 = scalar_lea.sflag [#allocation4], 1
    %943 = vsyncpa %s942, 1
    %944 = vsyncpa [#allocation10], 1
    %s945 = scalar_lea.sflag [#allocation10], 1
    %946 = vsyncpa %s945, 1

// kernel: tpu_custom_call.1
$region0: #{tpu_custom_call.1}
  #allocation0 [shape = 'u32[]', space=smem, size = 0x4, offset = 0x4, fixed_abs, tag = 'smem constant byte address 0x4 - core index']
  #allocation1 [shape = 'u32[144,128]{1,0:T(1,128)}', space=vmem, size = 0x12000, scoped, tag = 'internal scratch']
  %s0 = inlined_call_operand.hbm [shape: f32[64,128], index: 0, kind: input, shape index: {}]
  %s1 = inlined_call_operand.hbm [shape: f32[128,256], index: 1, kind: input, shape index: {}]
  %s2 = inlined_call_operand.vmem [shape: f32[1,256], index: 2, kind: input, shape index: {}]
  %s3 = inlined_call_operand.hbm [shape: f32[256,128], index: 3, kind: input, shape index: {}]
  %s4 = inlined_call_operand.hbm [shape: f32[64,256], index: 4, kind: output, shape index: {0}]
  %s5 = inlined_call_operand.hbm [shape: f32[64,128], index: 5, kind: output, shape index: {1}]
  %6 = xla_tuple %s4, %s5
  %s7 = sld [smem:[#allocation0]]
  $region69: #{tpu_custom_call.1} parent=0
    _
  %s9 = ssub.s32 1, %s7
  %s10 = scalar_select 0, %s9, %s7
  $region1: #{tpu_custom_call.1} parent=0
    #allocation2 [shape = 'u8[16384]{0}', space=vmem, size = 0x4000, scoped, tag = 'input window, operand 0']
    #allocation3 [shape = 's32[2]{0}', space=sflag, size = 0x8, scoped, tag = 'scoped memory for tpu_custom_call.1']
    #allocation4 [shape = 's32[2]{0}', space=sflag, size = 0x8, scoped, tag = 'scoped memory for tpu_custom_call.1']
    #allocation5 [shape = 'u8[131072]{0}', space=vmem, size = 0x20000, scoped, tag = 'input window, operand 1, single buffered']
    #allocation6 [shape = 's32[1]{0}', space=sflag, size = 0x4, scoped, tag = 'scoped memory for tpu_custom_call.1']
    #allocation7 [shape = 'u8[131072]{0}', space=vmem, size = 0x20000, scoped, tag = 'input window, operand 3, single buffered']
    #allocation8 [shape = 'u8[32768]{0}', space=vmem, size = 0x8000, scoped, tag = 'output window, operand 0']
    #allocation9 [shape = 'u8[16384]{0}', space=vmem, size = 0x4000, scoped, tag = 'output window, operand 1']
    #allocation10 [shape = 's32[2]{0}', space=sflag, size = 0x8, scoped, tag = 'scoped memory for tpu_custom_call.1']
    %11 = vsyncpa [#allocation3], 0
    %s12 = scalar_lea.sflag [#allocation3], 1
    %13 = vsyncpa %s12, 0
    %14 = vsyncpa [#allocation6], 0
    %15 = vsyncpa [#allocation4], 0
    %s16 = scalar_lea.sflag [#allocation4], 1
    %17 = vsyncpa %s16, 0
    %18 = vsyncpa [#allocation10], 0
    %s19 = scalar_lea.sflag [#allocation10], 1
    %20 = vsyncpa %s19, 0
    loop: start=0, step=1, limit=6
    $region2: #{tpu_custom_call.1} parent=1 // loop_pre_header
      _
    $region3: #{tpu_custom_call.1} parent=1 // loop_header
      %s22 = sphi 0, %s26
      %p23 = scmp.ge.s32.totalorder %s22, 6
      %s32 = sphi 0, %s34
      %s35 = sphi 0, %s32
      %s36 = sphi 0, %s35
      %s52 = sphi 0, %s36
      %s56 = sphi 0, %s56
      %s58 = sphi 0, %s56
      %s59 = sphi 0, %s58
      %s73 = sphi 0, %s59
      %s77 = sphi 0, %s77
      %s79 = sphi 0, %s77
      %s80 = sphi 0, %s79
      %s94 = sphi 0, %s80
      %s98 = sphi 0, %s98
      %s100 = sphi 0, %s98
      %s101 = sphi 0, %s100
      %s115 = sphi 0, %s101
      %s121 = sphi 0, %s123
      %s124 = sphi 0, %s121
      %s125 = sphi 0, %s124
      %s141 = sphi 0, %s125
      %s147 = sphi 0, %s149
      %s150 = sphi 0, %s147
      %s151 = sphi 0, %s150
      %s167 = sphi 0, %s151
    $region4: #{tpu_custom_call.1} parent=1 // loop_header_branch
      %25 = sbr.rel (%p23) target = $region8
    $region5: #{tpu_custom_call.1} parent=1 // loop_body
      %s27 = ssub.s32 %s22, 1
      %s28 = ssub.s32 %s22, 2
      %s29 = sadd.s32 %s22, 1
      %s30 = ssub.s32 %s22, %s29
      %p31 = scmp.eq.s32.totalorder %s30, 0
      %s33 = sadd.s32 %s32, 1
      %s34 = scalar_select %p31, %s32, %s33
      %p37 = pneg %p31
      %p38 = scmp.eq.s32.totalorder %s22, 3
      %p39 = por %p37, %p38
      %p40 = scmp.ne.s32.totalorder %s32, %s35
      %p41 = scmp.eq.s32.totalorder %s22, 0
      %p42 = por %p40, %p41
      %p43 = scmp.ne.s32.totalorder %s32, %s35
      %p44 = scmp.eq.s32.totalorder %s27, 3
      %p45 = por %p43, %p44
      %p46 = scmp.ne.s32.totalorder %s35, %s36
      %p47 = scmp.eq.s32.totalorder %s27, 0
      %p48 = por %p46, %p47
      %p49 = scmp.ne.s32.totalorder %s35, %s36
      %p50 = scmp.eq.s32.totalorder %s28, 3
      %p51 = por %p49, %p50
      %p53 = scmp.ne.s32.totalorder %s36, %s52
      %p54 = scmp.eq.s32.totalorder %s28, 0
      %p55 = por %p53, %p54
      %s57 = sadd.s32 %s56, 1
      %p60 = scmp.eq.s32.totalorder %s22, 3
      %p61 = scmp.ne.s32.totalorder %s56, %s58
      %p62 = scmp.eq.s32.totalorder %s22, 0
      %p63 = por %p61, %p62
      %p64 = scmp.ne.s32.totalorder %s56, %s58
      %p65 = scmp.eq.s32.totalorder %s27, 3
      %p66 = por %p64, %p65
      %p67 = scmp.ne.s32.totalorder %s58, %s59
      %p68 = scmp.eq.s32.totalorder %s27, 0
      %p69 = por %p67, %p68
      %p70 = scmp.ne.s32.totalorder %s58, %s59
      %p71 = scmp.eq.s32.totalorder %s28, 3
      %p72 = por %p70, %p71
      %p74 = scmp.ne.s32.totalorder %s59, %s73
      %p75 = scmp.eq.s32.totalorder %s28, 0
      %p76 = por %p74, %p75
      %s78 = sadd.s32 %s77, 1
      %p81 = scmp.eq.s32.totalorder %s22, 3
      %p82 = scmp.ne.s32.totalorder %s77, %s79
      %p83 = scmp.eq.s32.totalorder %s22, 0
      %p84 = por %p82, %p83
      %p85 = scmp.ne.s32.totalorder %s77, %s79
      %p86 = scmp.eq.s32.totalorder %s27, 3
      %p87 = por %p85, %p86
      %p88 = scmp.ne.s32.totalorder %s79, %s80
      %p89 = scmp.eq.s32.totalorder %s27, 0
      %p90 = por %p88, %p89
      %p91 = scmp.ne.s32.totalorder %s79, %s80
      %p92 = scmp.eq.s32.totalorder %s28, 3
      %p93 = por %p91, %p92
      %p95 = scmp.ne.s32.totalorder %s80, %s94
      %p96 = scmp.eq.s32.totalorder %s28, 0
      %p97 = por %p95, %p96
      %s99 = sadd.s32 %s98, 1
      %p102 = scmp.eq.s32.totalorder %s22, 3
      %p103 = scmp.ne.s32.totalorder %s98, %s100
      %p104 = scmp.eq.s32.totalorder %s22, 0
      %p105 = por %p103, %p104
      %p106 = scmp.ne.s32.totalorder %s98, %s100
      %p107 = scmp.eq.s32.totalorder %s27, 3
      %p108 = por %p106, %p107
      %p109 = scmp.ne.s32.totalorder %s100, %s101
      %p110 = scmp.eq.s32.totalorder %s27, 0
      %p111 = por %p109, %p110
      %p112 = scmp.ne.s32.totalorder %s100, %s101
      %p113 = scmp.eq.s32.totalorder %s28, 3
      %p114 = por %p112, %p113
      %p116 = scmp.ne.s32.totalorder %s101, %s115
      %p117 = scmp.eq.s32.totalorder %s28, 0
      %p118 = por %p116, %p117
      %s119 = ssub.s32 %s22, %s29
      %p120 = scmp.eq.s32.totalorder %s119, 0
      %s122 = sadd.s32 %s121, 1
      %s123 = scalar_select %p120, %s121, %s122
      %p126 = pneg %p120
      %p127 = scmp.eq.s32.totalorder %s22, 3
      %p128 = por %p126, %p127
      %p129 = scmp.ne.s32.totalorder %s121, %s124
      %p130 = scmp.eq.s32.totalorder %s22, 0
      %p131 = por %p129, %p130
      %p132 = scmp.ne.s32.totalorder %s121, %s124
      %p133 = scmp.eq.s32.totalorder %s27, 3
      %p134 = por %p132, %p133
      %p135 = scmp.ne.s32.totalorder %s124, %s125
      %p136 = scmp.eq.s32.totalorder %s27, 0
      %p137 = por %p135, %p136
      %p138 = scmp.ne.s32.totalorder %s124, %s125
      %p139 = scmp.eq.s32.totalorder %s28, 3
      %p140 = por %p138, %p139
      %p142 = scmp.ne.s32.totalorder %s125, %s141
      %p143 = scmp.eq.s32.totalorder %s28, 0
      %p144 = por %p142, %p143
      %s145 = ssub.s32 %s22, %s29
      %p146 = scmp.eq.s32.totalorder %s145, 0
      %s148 = sadd.s32 %s147, 1
      %s149 = scalar_select %p146, %s147, %s148
      %p152 = pneg %p146
      %p153 = scmp.eq.s32.totalorder %s22, 3
      %p154 = por %p152, %p153
      %p155 = scmp.ne.s32.totalorder %s147, %s150
      %p156 = scmp.eq.s32.totalorder %s22, 0
      %p157 = por %p155, %p156
      %p158 = scmp.ne.s32.totalorder %s147, %s150
      %p159 = scmp.eq.s32.totalorder %s27, 3
      %p160 = por %p158, %p159
      %p161 = scmp.ne.s32.totalorder %s150, %s151
      %p162 = scmp.eq.s32.totalorder %s27, 0
      %p163 = por %p161, %p162
      %p164 = scmp.ne.s32.totalorder %s150, %s151
      %p165 = scmp.eq.s32.totalorder %s28, 3
      %p166 = por %p164, %p165
      %p168 = scmp.ne.s32.totalorder %s151, %s167
      %p169 = scmp.eq.s32.totalorder %s28, 0
      %p170 = por %p168, %p169
      %p171 = scmp.le.s32.totalorder 1, %s22
      %p172 = scmp.lt.s32.totalorder %s22, 5
      %p173 = pnand %p171, %p172
      %p174 = pneg %p173
      // Predicated region
      $region9: #{tpu_custom_call.1} parent=5 // pred_check
        _
      $region10: #{tpu_custom_call.1} parent=5 // pred_check_branch
        %176 = sbr.rel (%p173) target = $region12
      $region11: #{tpu_custom_call.1} parent=5 // pred_region
        %s177 = ssub.s32 %s22, 1
        // Predicated region
        $region13: #{tpu_custom_call.1} parent=11 // pred_check
          %p178 = pneg %p69
        $region14: #{tpu_custom_call.1} parent=11 // pred_check_branch
          %180 = sbr.rel (%p178) target = $region16
        $region15: #{tpu_custom_call.1} parent=11 // pred_region
          %s182 = ssub.s32 4096, 4096
          %183 = vsyncadd [#allocation6], %s182
          %s184 = sshll.u32 [#allocation5], 4
          %s185 = int_to_ptr.vmem [resolvable:$true] %s184
          %190 = dma.hbm_to_vmem [thread:$0]  %s1, 4096, %s185, [#allocation6], 256, 256, 16
        $region16: #{tpu_custom_call.1} parent=11 // pred_fallthru
          _
        // Predicated region
        $region17: #{tpu_custom_call.1} parent=11 // pred_check
          %p191 = pneg %p90
        $region18: #{tpu_custom_call.1} parent=11 // pred_check_branch
          %193 = sbr.rel (%p191) target = $region20
        $region19: #{tpu_custom_call.1} parent=11 // pred_region
          _
        $region20: #{tpu_custom_call.1} parent=11 // pred_fallthru
          _
        // Predicated region
        $region21: #{tpu_custom_call.1} parent=11 // pred_check
          %p194 = pneg %p111
        $region22: #{tpu_custom_call.1} parent=11 // pred_check_branch
          %196 = sbr.rel (%p194) target = $region24
        $region23: #{tpu_custom_call.1} parent=11 // pred_region
          %s198 = ssub.s32 4096, 4096
          %199 = vsyncadd [#allocation6], %s198
          %s200 = sshll.u32 [#allocation7], 4
          %s201 = int_to_ptr.vmem [resolvable:$true] %s200
          %206 = dma.hbm_to_vmem [thread:$0]  %s3, 4096, %s201, [#allocation6], 128, 128, 8
        $region24: #{tpu_custom_call.1} parent=11 // pred_fallthru
          _
      $region12: #{tpu_custom_call.1} parent=5 // pred_fallthru
        _
      %p207 = scmp.lt.s32.totalorder %s22, 4
      // Predicated region
      $region25: #{tpu_custom_call.1} parent=5 // pred_check
        %p208 = pneg %p207
      $region26: #{tpu_custom_call.1} parent=5 // pred_check_branch
        %210 = sbr.rel (%p208) target = $region28
      $region27: #{tpu_custom_call.1} parent=5 // pred_region
        // Predicated region
        $region29: #{tpu_custom_call.1} parent=27 // pred_check
          %p211 = pneg %p42
        $region30: #{tpu_custom_call.1} parent=27 // pred_check_branch
          %213 = sbr.rel (%p211) target = $region32
        $region31: #{tpu_custom_call.1} parent=27 // pred_region
          %s214 = sand.u32 %s32, 1
          %s215 = scalar_lea.sflag [#allocation3], %s214
          %s216 = sand.u32 %s32, 1
          %s217 = smul.addr %s216, 16
          %s218 = scalar_lea.vmem [#allocation2], %s217
          %s219 = smul.u32 2, %s22
          %s221 = ssub.s32 256, 256
          %222 = vsyncadd %s215, %s221
          %s223 = smul.addr %s219, 128
          %s224 = scalar_lea.hbm %s0, %s223
          %s225 = sshll.u32 %s218, 4
          %s226 = int_to_ptr.vmem [resolvable:$true] %s225
          %231 = dma.hbm_to_vmem [thread:$0]  %s224, 256, %s226, %s215, 128, 128, 8
        $region32: #{tpu_custom_call.1} parent=27 // pred_fallthru
          _
      $region28: #{tpu_custom_call.1} parent=5 // pred_fallthru
        _
      %p232 = scmp.le.s32.totalorder 1, %s22
      %p233 = scmp.lt.s32.totalorder %s22, 5
      %p234 = pnand %p232, %p233
      %p235 = pneg %p234
      // Predicated region
      $region33: #{tpu_custom_call.1} parent=5 // pred_check
        _
      $region34: #{tpu_custom_call.1} parent=5 // pred_check_branch
        %237 = sbr.rel (%p234) target = $region36
      $region35: #{tpu_custom_call.1} parent=5 // pred_region
        %s238 = ssub.s32 %s22, 1
        %s239 = sand.u32 %s35, 1
        %s240 = scalar_lea.sflag [#allocation3], %s239
        %s241 = sand.u32 %s35, 1
        %s242 = smul.addr %s241, 16
        %s243 = scalar_lea.vmem [#allocation2], %s242
        // Predicated region
        $region37: #{tpu_custom_call.1} parent=35 // pred_check
          %p244 = pneg %p48
        $region38: #{tpu_custom_call.1} parent=35 // pred_check_branch
          %246 = sbr.rel (%p244) target = $region40
        $region39: #{tpu_custom_call.1} parent=35 // pred_region
          %247 = dma.done %s240, 256
        $region40: #{tpu_custom_call.1} parent=35 // pred_fallthru
          _
        // Predicated region
        $region41: #{tpu_custom_call.1} parent=35 // pred_check
          %p248 = pneg %p69
        $region42: #{tpu_custom_call.1} parent=35 // pred_check_branch
          %250 = sbr.rel (%p248) target = $region44
        $region43: #{tpu_custom_call.1} parent=35 // pred_region
          %251 = dma.done [#allocation6], 4096
        $region44: #{tpu_custom_call.1} parent=35 // pred_fallthru
          _
        // Predicated region
        $region45: #{tpu_custom_call.1} parent=35 // pred_check
          %p252 = pneg %p111
        $region46: #{tpu_custom_call.1} parent=35 // pred_check_branch
          %254 = sbr.rel (%p252) target = $region48
        $region47: #{tpu_custom_call.1} parent=35 // pred_region
          %255 = dma.done [#allocation6], 4096
        $region48: #{tpu_custom_call.1} parent=35 // pred_fallthru
          _
        %s256 = sand.u32 %s35, 1
        %s257 = scalar_lea.sflag [#allocation3], %s256
        %s258 = sand.u32 %s35, 1
        %s259 = smul.addr %s258, 16
        %s260 = scalar_lea.vmem [#allocation2], %s259
        %p261 = pneg %p48
        %p262 = pneg %p45
        %p263 = pneg %p69
        %p264 = pneg %p66
        %p265 = pneg %p90
        %p266 = pneg %p87
        %p267 = pneg %p111
        %p268 = pneg %p108
        %p269 = pneg %p137
        %p270 = pneg %p134
        %s271 = sand.u32 %s124, 1
        %s272 = scalar_lea.sflag [#allocation4], %s271
        %s273 = sand.u32 %s124, 1
        %s274 = smul.addr %s273, 32
        %s275 = scalar_lea.vmem [#allocation8], %s274
        %p276 = pneg %p163
        %p277 = pneg %p160
        %s278 = sand.u32 %s150, 1
        %s279 = scalar_lea.sflag [#allocation10], %s278
        %s280 = sand.u32 %s150, 1
        %s281 = smul.addr %s280, 16
        %s282 = scalar_lea.vmem [#allocation9], %s281
        %s283 = smul.u32 2, %s27
        %s284 = smul.u32 2, %s27
        %s285 = smul.u32 2, %s27
        %v286 = vld [vmem:[%s243] sm:$0xff]
        %v287 = vld [vmem:[%s243 + $0x8] sm:$0xff]
        %v288 = vld [vmem:[#allocation5] sm:$0xff]
        %v289 = vld [vmem:[#allocation5 + $0x8] sm:$0xff]
        %v290 = vld [vmem:[#allocation5 + $0x10] sm:$0xff]
        %v291 = vld [vmem:[#allocation5 + $0x18] sm:$0xff]
        %v292 = vld [vmem:[#allocation5 + $0x20] sm:$0xff]
        %v293 = vld [vmem:[#allocation5 + $0x28] sm:$0xff]
        %v294 = vld [vmem:[#allocation5 + $0x30] sm:$0xff]
        %v295 = vld [vmem:[#allocation5 + $0x38] sm:$0xff]
        %v296 = vld [vmem:[#allocation5 + $0x40] sm:$0xff]
        %v297 = vld [vmem:[#allocation5 + $0x48] sm:$0xff]
        %v298 = vld [vmem:[#allocation5 + $0x50] sm:$0xff]
        %v299 = vld [vmem:[#allocation5 + $0x58] sm:$0xff]
        %v300 = vld [vmem:[#allocation5 + $0x60] sm:$0xff]
        %v301 = vld [vmem:[#allocation5 + $0x68] sm:$0xff]
        %v302 = vld [vmem:[#allocation5 + $0x70] sm:$0xff]
        %v303 = vld [vmem:[#allocation5 + $0x78] sm:$0xff]
        %v304 = vld [vmem:[#allocation5 + $0x80] sm:$0xff]
        %v305 = vld [vmem:[#allocation5 + $0x88] sm:$0xff]
        %v306 = vld [vmem:[#allocation5 + $0x90] sm:$0xff]
        %v307 = vld [vmem:[#allocation5 + $0x98] sm:$0xff]
        %v308 = vld [vmem:[#allocation5 + $0xa0] sm:$0xff]
        %v309 = vld [vmem:[#allocation5 + $0xa8] sm:$0xff]
        %v310 = vld [vmem:[#allocation5 + $0xb0] sm:$0xff]
        %v311 = vld [vmem:[#allocation5 + $0xb8] sm:$0xff]
        %v312 = vld [vmem:[#allocation5 + $0xc0] sm:$0xff]
        %v313 = vld [vmem:[#allocation5 + $0xc8] sm:$0xff]
        %v314 = vld [vmem:[#allocation5 + $0xd0] sm:$0xff]
        %v315 = vld [vmem:[#allocation5 + $0xd8] sm:$0xff]
        %v316 = vld [vmem:[#allocation5 + $0xe0] sm:$0xff]
        %v317 = vld [vmem:[#allocation5 + $0xe8] sm:$0xff]
        %v318 = vld [vmem:[#allocation5 + $0xf0] sm:$0xff]
        %v319 = vld [vmem:[#allocation5 + $0xf8] sm:$0xff]
        %v320 = vld [vmem:[%s2] sm:$0x3]
        %v322 = vlaneseq
        %v323 = vshrl.u32 %v322, 7
        %v324 = vsub.s32 0, %v323
        %v325 = vrot.slane %v320, %v324
        %v326 = vlaneseq
        %v327 = vshrl.u32 %v326, 7
        %v328 = vsub.s32 1, %v327
        %v329 = vrot.slane %v320, %v328
        %332 = vmatprep.subr.mxu0 %v289
        %333 = vmatpush1.msra.mxu0 %v288
        %334 = vmatprep.subr.mxu0 %v291
        %335 = vmatpush1.msra.mxu0 %v290
        %336 = vmatprep.subr.mxu0 %v293
        %337 = vmatpush1.msra.mxu0 %v292
        %338 = vmatprep.subr.mxu0 %v295
        %339 = vmatpush1.msra.mxu0 %v294
        %340 = vmatprep.subr.mxu0 %v297
        %341 = vmatpush1.msra.mxu0 %v296
        %342 = vmatprep.subr.mxu0 %v299
        %343 = vmatpush1.msra.mxu0 %v298
        %344 = vmatprep.subr.mxu0 %v301
        %345 = vmatpush1.msra.mxu0 %v300
        %346 = vmatprep.subr.mxu0 %v303
        %347 = vmatpush1.msra.mxu0 %v302
        %348 = vmatprep.subr.mxu0 %v305
        %349 = vmatpush1.msra.mxu0 %v304
        %350 = vmatprep.subr.mxu0 %v307
        %351 = vmatpush1.msra.mxu0 %v306
        %352 = vmatprep.subr.mxu0 %v309
        %353 = vmatpush1.msra.mxu0 %v308
        %354 = vmatprep.subr.mxu0 %v311
        %355 = vmatpush1.msra.mxu0 %v310
        %356 = vmatprep.subr.mxu0 %v313
        %357 = vmatpush1.msra.mxu0 %v312
        %358 = vmatprep.subr.mxu0 %v315
        %359 = vmatpush1.msra.mxu0 %v314
        %360 = vmatprep.subr.mxu0 %v317
        %361 = vmatpush1.msra.mxu0 %v316
        %362 = vmatprep.subr.mxu0 %v319
        %363 = vmatpush1.msra.mxu0 %v318
        %364 = vmatprep.subr.mxu0 0.0
        %365 = vmatpush1.msra.mxu0 0.0
        %366 = vmatprep.subr.mxu0 0.0
        %367 = vmatpush1.msra.mxu0 0.0
        %368 = vmatprep.subr.mxu0 0.0
        %369 = vmatpush1.msra.mxu0 0.0
        %370 = vmatprep.subr.mxu0 0.0
        %371 = vmatpush1.msra.mxu0 0.0
        %372 = vmatprep.subr.mxu0 0.0
        %373 = vmatpush1.msra.mxu0 0.0
        %374 = vmatprep.subr.mxu0 0.0
        %375 = vmatpush1.msra.mxu0 0.0
        %376 = vmatprep.subr.mxu0 0.0
        %377 = vmatpush1.msra.mxu0 0.0
        %378 = vmatprep.subr.mxu0 0.0
        %379 = vmatpush1.msra.mxu0 0.0
        %380 = vmatprep.subr.mxu0 0.0
        %381 = vmatpush1.msra.mxu0 0.0
        %382 = vmatprep.subr.mxu0 0.0
        %383 = vmatpush1.msra.mxu0 0.0
        %384 = vmatprep.subr.mxu0 0.0
        %385 = vmatpush1.msra.mxu0 0.0
        %386 = vmatprep.subr.mxu0 0.0
        %387 = vmatpush1.msra.mxu0 0.0
        %388 = vmatprep.subr.mxu0 0.0
        %389 = vmatpush1.msra.mxu0 0.0
        %390 = vmatprep.subr.mxu0 0.0
        %391 = vmatpush1.msra.mxu0 0.0
        %392 = vmatprep.subr.mxu0 0.0
        %393 = vmatpush1.msra.mxu0 0.0
        %394 = vmatprep.subr.mxu0 0.0
        %395 = vmatpush1.msra.mxu0 0.0
        %396 = vmatprep.mubr.f32.mxu0 0.0
        %397 = vmatmul.mubr.f32.gmra.mrb[0].mxu0 %v286
        %v398 = vpop.f32.mrb[0].mxu0
        %v399 = vadd.f32 %v325, %v398
        %v400 = vpop.f32.mrb[0].mxu0
        %v401 = vadd.f32 %v329, %v400
        %402 = vmatprep.mubr.f32.mxu0 0.0
        %403 = vmatmul.mubr.f32.gmra.mrb[0].mxu0 %v287
        %v404 = vpop.f32.mrb[0].mxu0
        %v405 = vadd.f32 %v325, %v404
        %v406 = vpop.f32.mrb[0].mxu0
        %v407 = vadd.f32 %v329, %v406
        %408 = vdwg.mxu0
        %v409 = vmax.f32 %v399, 0.0
        %v410 = vmax.f32 %v401, 0.0
        %v411 = vmax.f32 %v405, 0.0
        %v412 = vmax.f32 %v407, 0.0
        %v413 = vlaneseq
        %v414 = vand.u32 %v413, 127
        %v415 = vadd.s32 %v414, 128
        %v416 = vsub.s32 255, %v414
        %v417 = vsub.s32 255, %v415
        %v422 = vand.u32 %v409, 4294967040
        %v423 = vand.u32 %v410, 4294967040
        %v424 = vand.u32 %v411, 4294967040
        %v425 = vand.u32 %v412, 4294967040
        %v426 = vor.u32 %v422, %v416
        %v427 = vor.u32 %v423, %v417
        %v428 = vor.u32 %v424, %v416
        %v429 = vor.u32 %v425, %v417
        %vm430 = vcmp.gt.s32.totalorder %v426, %v427
        %v431 = vsel %vm430, %v426, %v427
        %v432 = vand.u32 %v431, 65535
        %v433 = vshra.s32 %v431, 16
        %v434 = vcvt.s32.f32 %v432
        %v435 = vcvt.s32.f32 %v433
        %436 = vmax.xlane.f32.xlu0 %v435
        %v437 = vpop.xlane.xlu0 %436
        %vm438 = vcmp.eq.f32.partialorder %v435, %v437
        %v439 = vsel %vm438, %v434, -inf
        %440 = vmax.xlane.f32.xlu0 %v439
        %v441 = vpop.xlane.xlu0 %440
        %v442 = vcvt.f32.s32 %v441
        %v443 = vcvt.f32.s32 %v437
        %v444 = vshll.u32 %v443, 16
        %v445 = vadd.s32 %v444, %v442
        %vm446 = vcmp.gt.s32.totalorder %v428, %v429
        %v447 = vsel %vm446, %v428, %v429
        %v448 = vand.u32 %v447, 65535
        %v449 = vshra.s32 %v447, 16
        %v450 = vcvt.s32.f32 %v448
        %v451 = vcvt.s32.f32 %v449
        %452 = vmax.xlane.f32.xlu0 %v451
        %v453 = vpop.xlane.xlu0 %452
        %vm454 = vcmp.eq.f32.partialorder %v451, %v453
        %v455 = vsel %vm454, %v450, -inf
        %456 = vmax.xlane.f32.xlu0 %v455
        %v457 = vpop.xlane.xlu0 %456
        %v458 = vcvt.f32.s32 %v457
        %v459 = vcvt.f32.s32 %v453
        %v460 = vshll.u32 %v459, 16
        %v461 = vadd.s32 %v460, %v458
        %vm462 = vcmp.eq.s32.totalorder %v426, %v445
        %vm463 = vcmp.eq.s32.totalorder %v427, %v445
        %vm464 = vcmp.eq.s32.totalorder %v428, %v461
        %vm465 = vcmp.eq.s32.totalorder %v429, %v461
        %v466 = vsel %vm462, 4294967295, %v426
        %v467 = vsel %vm463, 4294967295, %v427
        %v468 = vsel %vm464, 4294967295, %v428
        %v469 = vsel %vm465, 4294967295, %v429
        %vm470 = vcmp.gt.s32.totalorder %v466, %v467
        %v471 = vsel %vm470, %v466, %v467
        %v472 = vand.u32 %v471, 65535
        %v473 = vshra.s32 %v471, 16
        %v474 = vcvt.s32.f32 %v472
        %v475 = vcvt.s32.f32 %v473
        %476 = vmax.xlane.f32.xlu0 %v475
        %v477 = vpop.xlane.xlu0 %476
        %vm478 = vcmp.eq.f32.partialorder %v475, %v477
        %v479 = vsel %vm478, %v474, -inf
        %480 = vmax.xlane.f32.xlu0 %v479
        %v481 = vpop.xlane.xlu0 %480
        %v482 = vcvt.f32.s32 %v481
        %v483 = vcvt.f32.s32 %v477
        %v484 = vshll.u32 %v483, 16
        %v485 = vadd.s32 %v484, %v482
        %vm486 = vcmp.gt.s32.totalorder %v468, %v469
        %v487 = vsel %vm486, %v468, %v469
        %v488 = vand.u32 %v487, 65535
        %v489 = vshra.s32 %v487, 16
        %v490 = vcvt.s32.f32 %v488
        %v491 = vcvt.s32.f32 %v489
        %492 = vmax.xlane.f32.xlu0 %v491
        %v493 = vpop.xlane.xlu0 %492
        %vm494 = vcmp.eq.f32.partialorder %v491, %v493
        %v495 = vsel %vm494, %v490, -inf
        %496 = vmax.xlane.f32.xlu0 %v495
        %v497 = vpop.xlane.xlu0 %496
        %v498 = vcvt.f32.s32 %v497
        %v499 = vcvt.f32.s32 %v493
        %v500 = vshll.u32 %v499, 16
        %v501 = vadd.s32 %v500, %v498
        %vm502 = vcmp.eq.s32.totalorder %v466, %v485
        %vm503 = vcmp.eq.s32.totalorder %v467, %v485
        %vm504 = vcmp.eq.s32.totalorder %v468, %v501
        %vm505 = vcmp.eq.s32.totalorder %v469, %v501
        %v506 = vsel %vm502, 4294967295, %v466
        %v507 = vsel %vm503, 4294967295, %v467
        %v508 = vsel %vm504, 4294967295, %v468
        %v509 = vsel %vm505, 4294967295, %v469
        %vm510 = vcmp.gt.s32.totalorder %v506, %v507
        %v511 = vsel %vm510, %v506, %v507
        %v512 = vand.u32 %v511, 65535
        %v513 = vshra.s32 %v511, 16
        %v514 = vcvt.s32.f32 %v512
        %v515 = vcvt.s32.f32 %v513
        %516 = vmax.xlane.f32.xlu0 %v515
        %v517 = vpop.xlane.xlu0 %516
        %vm518 = vcmp.eq.f32.partialorder %v515, %v517
        %v519 = vsel %vm518, %v514, -inf
        %520 = vmax.xlane.f32.xlu0 %v519
        %v521 = vpop.xlane.xlu0 %520
        %v522 = vcvt.f32.s32 %v521
        %v523 = vcvt.f32.s32 %v517
        %v524 = vshll.u32 %v523, 16
        %v525 = vadd.s32 %v524, %v522
        %vm526 = vcmp.gt.s32.totalorder %v508, %v509
        %v527 = vsel %vm526, %v508, %v509
        %v528 = vand.u32 %v527, 65535
        %v529 = vshra.s32 %v527, 16
        %v530 = vcvt.s32.f32 %v528
        %v531 = vcvt.s32.f32 %v529
        %532 = vmax.xlane.f32.xlu0 %v531
        %v533 = vpop.xlane.xlu0 %532
        %vm534 = vcmp.eq.f32.partialorder %v531, %v533
        %v535 = vsel %vm534, %v530, -inf
        %536 = vmax.xlane.f32.xlu0 %v535
        %v537 = vpop.xlane.xlu0 %536
        %v538 = vcvt.f32.s32 %v537
        %v539 = vcvt.f32.s32 %v533
        %v540 = vshll.u32 %v539, 16
        %v541 = vadd.s32 %v540, %v538
        %vm542 = vcmp.eq.s32.totalorder %v506, %v525
        %vm543 = vcmp.eq.s32.totalorder %v507, %v525
        %vm544 = vcmp.eq.s32.totalorder %v508, %v541
        %vm545 = vcmp.eq.s32.totalorder %v509, %v541
        %v546 = vsel %vm542, 4294967295, %v506
        %v547 = vsel %vm543, 4294967295, %v507
        %v548 = vsel %vm544, 4294967295, %v508
        %v549 = vsel %vm545, 4294967295, %v509
        %vm550 = vcmp.gt.s32.totalorder %v546, %v547
        %v551 = vsel %vm550, %v546, %v547
        %v552 = vand.u32 %v551, 65535
        %v553 = vshra.s32 %v551, 16
        %v554 = vcvt.s32.f32 %v552
        %v555 = vcvt.s32.f32 %v553
        %556 = vmax.xlane.f32.xlu0 %v555
        %v557 = vpop.xlane.xlu0 %556
        %vm558 = vcmp.eq.f32.partialorder %v555, %v557
        %v559 = vsel %vm558, %v554, -inf
        %560 = vmax.xlane.f32.xlu0 %v559
        %v561 = vpop.xlane.xlu0 %560
        %v562 = vcvt.f32.s32 %v561
        %v563 = vcvt.f32.s32 %v557
        %v564 = vshll.u32 %v563, 16
        %v565 = vadd.s32 %v564, %v562
        %vm566 = vcmp.gt.s32.totalorder %v548, %v549
        %v567 = vsel %vm566, %v548, %v549
        %v568 = vand.u32 %v567, 65535
        %v569 = vshra.s32 %v567, 16
        %v570 = vcvt.s32.f32 %v568
        %v571 = vcvt.s32.f32 %v569
        %572 = vmax.xlane.f32.xlu0 %v571
        %v573 = vpop.xlane.xlu0 %572
        %vm574 = vcmp.eq.f32.partialorder %v571, %v573
        %v575 = vsel %vm574, %v570, -inf
        %576 = vmax.xlane.f32.xlu0 %v575
        %v577 = vpop.xlane.xlu0 %576
        %v578 = vcvt.f32.s32 %v577
        %v579 = vcvt.f32.s32 %v573
        %v580 = vshll.u32 %v579, 16
        %v581 = vadd.s32 %v580, %v578
        %vm582 = vcmp.eq.s32.totalorder %v546, %v565
        %vm583 = vcmp.eq.s32.totalorder %v547, %v565
        %vm584 = vcmp.eq.s32.totalorder %v548, %v581
        %vm585 = vcmp.eq.s32.totalorder %v549, %v581
        %v586 = vsel %vm582, 4294967295, %v546
        %v587 = vsel %vm583, 4294967295, %v547
        %v588 = vsel %vm584, 4294967295, %v548
        %v589 = vsel %vm585, 4294967295, %v549
        %vm590 = vcmp.gt.s32.totalorder %v586, %v587
        %v591 = vsel %vm590, %v586, %v587
        %v592 = vand.u32 %v591, 65535
        %v593 = vshra.s32 %v591, 16
        %v594 = vcvt.s32.f32 %v592
        %v595 = vcvt.s32.f32 %v593
        %596 = vmax.xlane.f32.xlu0 %v595
        %v597 = vpop.xlane.xlu0 %596
        %vm598 = vcmp.eq.f32.partialorder %v595, %v597
        %v599 = vsel %vm598, %v594, -inf
        %600 = vmax.xlane.f32.xlu0 %v599
        %v601 = vpop.xlane.xlu0 %600
        %v602 = vcvt.f32.s32 %v601
        %v603 = vcvt.f32.s32 %v597
        %v604 = vshll.u32 %v603, 16
        %v605 = vadd.s32 %v604, %v602
        %vm606 = vcmp.gt.s32.totalorder %v588, %v589
        %v607 = vsel %vm606, %v588, %v589
        %v608 = vand.u32 %v607, 65535
        %v609 = vshra.s32 %v607, 16
        %v610 = vcvt.s32.f32 %v608
        %v611 = vcvt.s32.f32 %v609
        %612 = vmax.xlane.f32.xlu0 %v611
        %v613 = vpop.xlane.xlu0 %612
        %vm614 = vcmp.eq.f32.partialorder %v611, %v613
        %v615 = vsel %vm614, %v610, -inf
        %616 = vmax.xlane.f32.xlu0 %v615
        %v617 = vpop.xlane.xlu0 %616
        %v618 = vcvt.f32.s32 %v617
        %v619 = vcvt.f32.s32 %v613
        %v620 = vshll.u32 %v619, 16
        %v621 = vadd.s32 %v620, %v618
        %vm622 = vcmp.eq.s32.totalorder %v586, %v605
        %vm623 = vcmp.eq.s32.totalorder %v587, %v605
        %vm624 = vcmp.eq.s32.totalorder %v588, %v621
        %vm625 = vcmp.eq.s32.totalorder %v589, %v621
        %v626 = vsel %vm622, 4294967295, %v586
        %v627 = vsel %vm623, 4294967295, %v587
        %v628 = vsel %vm624, 4294967295, %v588
        %v629 = vsel %vm625, 4294967295, %v589
        %vm630 = vcmp.gt.s32.totalorder %v626, %v627
        %v631 = vsel %vm630, %v626, %v627
        %v632 = vand.u32 %v631, 65535
        %v633 = vshra.s32 %v631, 16
        %v634 = vcvt.s32.f32 %v632
        %v635 = vcvt.s32.f32 %v633
        %636 = vmax.xlane.f32.xlu0 %v635
        %v637 = vpop.xlane.xlu0 %636
        %vm638 = vcmp.eq.f32.partialorder %v635, %v637
        %v639 = vsel %vm638, %v634, -inf
        %640 = vmax.xlane.f32.xlu0 %v639
        %v641 = vpop.xlane.xlu0 %640
        %v642 = vcvt.f32.s32 %v641
        %v643 = vcvt.f32.s32 %v637
        %v644 = vshll.u32 %v643, 16
        %v645 = vadd.s32 %v644, %v642
        %vm646 = vcmp.gt.s32.totalorder %v628, %v629
        %v647 = vsel %vm646, %v628, %v629
        %v648 = vand.u32 %v647, 65535
        %v649 = vshra.s32 %v647, 16
        %v650 = vcvt.s32.f32 %v648
        %v651 = vcvt.s32.f32 %v649
        %652 = vmax.xlane.f32.xlu0 %v651
        %v653 = vpop.xlane.xlu0 %652
        %vm654 = vcmp.eq.f32.partialorder %v651, %v653
        %v655 = vsel %vm654, %v650, -inf
        %656 = vmax.xlane.f32.xlu0 %v655
        %v657 = vpop.xlane.xlu0 %656
        %v658 = vcvt.f32.s32 %v657
        %v659 = vcvt.f32.s32 %v653
        %v660 = vshll.u32 %v659, 16
        %v661 = vadd.s32 %v660, %v658
        %vm662 = vcmp.eq.s32.totalorder %v626, %v645
        %vm663 = vcmp.eq.s32.totalorder %v627, %v645
        %vm664 = vcmp.eq.s32.totalorder %v628, %v661
        %vm665 = vcmp.eq.s32.totalorder %v629, %v661
        %v666 = vsel %vm662, 4294967295, %v626
        %v667 = vsel %vm663, 4294967295, %v627
        %v668 = vsel %vm664, 4294967295, %v628
        %v669 = vsel %vm665, 4294967295, %v629
        %vm670 = vcmp.gt.s32.totalorder %v666, %v667
        %v671 = vsel %vm670, %v666, %v667
        %v672 = vand.u32 %v671, 65535
        %v673 = vshra.s32 %v671, 16
        %v674 = vcvt.s32.f32 %v672
        %v675 = vcvt.s32.f32 %v673
        %676 = vmax.xlane.f32.xlu0 %v675
        %v677 = vpop.xlane.xlu0 %676
        %vm678 = vcmp.eq.f32.partialorder %v675, %v677
        %v679 = vsel %vm678, %v674, -inf
        %680 = vmax.xlane.f32.xlu0 %v679
        %v681 = vpop.xlane.xlu0 %680
        %v682 = vcvt.f32.s32 %v681
        %v683 = vcvt.f32.s32 %v677
        %v684 = vshll.u32 %v683, 16
        %v685 = vadd.s32 %v684, %v682
        %vm686 = vcmp.gt.s32.totalorder %v668, %v669
        %v687 = vsel %vm686, %v668, %v669
        %v688 = vand.u32 %v687, 65535
        %v689 = vshra.s32 %v687, 16
        %v690 = vcvt.s32.f32 %v688
        %v691 = vcvt.s32.f32 %v689
        %692 = vmax.xlane.f32.xlu0 %v691
        %v693 = vpop.xlane.xlu0 %692
        %vm694 = vcmp.eq.f32.partialorder %v691, %v693
        %v695 = vsel %vm694, %v690, -inf
        %696 = vmax.xlane.f32.xlu0 %v695
        %v697 = vpop.xlane.xlu0 %696
        %v698 = vcvt.f32.s32 %v697
        %v699 = vcvt.f32.s32 %v693
        %v700 = vshll.u32 %v699, 16
        %v701 = vadd.s32 %v700, %v698
        %vm702 = vcmp.eq.s32.totalorder %v666, %v685
        %vm703 = vcmp.eq.s32.totalorder %v667, %v685
        %vm704 = vcmp.eq.s32.totalorder %v668, %v701
        %vm705 = vcmp.eq.s32.totalorder %v669, %v701
        %v706 = vsel %vm702, 4294967295, %v666
        %v707 = vsel %vm703, 4294967295, %v667
        %v708 = vsel %vm704, 4294967295, %v668
        %v709 = vsel %vm705, 4294967295, %v669
        %vm710 = vcmp.gt.s32.totalorder %v706, %v707
        %v711 = vsel %vm710, %v706, %v707
        %v712 = vand.u32 %v711, 65535
        %v713 = vshra.s32 %v711, 16
        %v714 = vcvt.s32.f32 %v712
        %v715 = vcvt.s32.f32 %v713
        %716 = vmax.xlane.f32.xlu0 %v715
        %v717 = vpop.xlane.xlu0 %716
        %vm718 = vcmp.eq.f32.partialorder %v715, %v717
        %v719 = vsel %vm718, %v714, -inf
        %720 = vmax.xlane.f32.xlu0 %v719
        %v721 = vpop.xlane.xlu0 %720
        %v722 = vcvt.f32.s32 %v721
        %v723 = vcvt.f32.s32 %v717
        %v724 = vshll.u32 %v723, 16
        %v725 = vadd.s32 %v724, %v722
        %vm726 = vcmp.gt.s32.totalorder %v708, %v709
        %v727 = vsel %vm726, %v708, %v709
        %v728 = vand.u32 %v727, 65535
        %v729 = vshra.s32 %v727, 16
        %v730 = vcvt.s32.f32 %v728
        %v731 = vcvt.s32.f32 %v729
        %732 = vmax.xlane.f32.xlu0 %v731
        %v733 = vpop.xlane.xlu0 %732
        %vm734 = vcmp.eq.f32.partialorder %v731, %v733
        %v735 = vsel %vm734, %v730, -inf
        %736 = vmax.xlane.f32.xlu0 %v735
        %v737 = vpop.xlane.xlu0 %736
        %v738 = vcvt.f32.s32 %v737
        %v739 = vcvt.f32.s32 %v733
        %v740 = vshll.u32 %v739, 16
        %v741 = vadd.s32 %v740, %v738
        %vm742 = vcmp.eq.s32.totalorder %v706, %v725
        %vm743 = vcmp.eq.s32.totalorder %v707, %v725
        %vm744 = vcmp.eq.s32.totalorder %v708, %v741
        %vm745 = vcmp.eq.s32.totalorder %v709, %v741
        %v746 = vsel %vm742, 4294967295, %v706
        %v747 = vsel %vm743, 4294967295, %v707
        %v748 = vsel %vm744, 4294967295, %v708
        %v749 = vsel %vm745, 4294967295, %v709
        %vm750 = vcmp.lt.s32.totalorder %v746, 0
        %vm751 = vcmp.lt.s32.totalorder %v747, 0
        %vm752 = vcmp.lt.s32.totalorder %v748, 0
        %vm753 = vcmp.lt.s32.totalorder %v749, 0
        %v754 = vsel %vm750, %v409, 0.0
        %v755 = vsel %vm751, %v410, 0.0
        %v756 = vsel %vm752, %v411, 0.0
        %v757 = vsel %vm753, %v412, 0.0
        %758 = vst [vmem:[%s275] sm:$0xff] %v754
        %759 = vst [vmem:[%s275 + $0x8] sm:$0xff] %v755
        %760 = vst [vmem:[%s275 + $0x10] sm:$0xff] %v756
        %761 = vst [vmem:[%s275 + $0x18] sm:$0xff] %v757
        %v762 = vld [vmem:[#allocation7] sm:$0xff]
        %v763 = vld [vmem:[#allocation7 + $0x8] sm:$0xff]
        %v764 = vld [vmem:[#allocation7 + $0x10] sm:$0xff]
        %v765 = vld [vmem:[#allocation7 + $0x18] sm:$0xff]
        %v766 = vld [vmem:[#allocation7 + $0x20] sm:$0xff]
        %v767 = vld [vmem:[#allocation7 + $0x28] sm:$0xff]
        %v768 = vld [vmem:[#allocation7 + $0x30] sm:$0xff]
        %v769 = vld [vmem:[#allocation7 + $0x38] sm:$0xff]
        %v770 = vld [vmem:[#allocation7 + $0x40] sm:$0xff]
        %v771 = vld [vmem:[#allocation7 + $0x48] sm:$0xff]
        %v772 = vld [vmem:[#allocation7 + $0x50] sm:$0xff]
        %v773 = vld [vmem:[#allocation7 + $0x58] sm:$0xff]
        %v774 = vld [vmem:[#allocation7 + $0x60] sm:$0xff]
        %v775 = vld [vmem:[#allocation7 + $0x68] sm:$0xff]
        %v776 = vld [vmem:[#allocation7 + $0x70] sm:$0xff]
        %v777 = vld [vmem:[#allocation7 + $0x78] sm:$0xff]
        %v778 = vld [vmem:[#allocation7 + $0x80] sm:$0xff]
        %v779 = vld [vmem:[#allocation7 + $0x88] sm:$0xff]
        %v780 = vld [vmem:[#allocation7 + $0x90] sm:$0xff]
        %v781 = vld [vmem:[#allocation7 + $0x98] sm:$0xff]
        %v782 = vld [vmem:[#allocation7 + $0xa0] sm:$0xff]
        %v783 = vld [vmem:[#allocation7 + $0xa8] sm:$0xff]
        %v784 = vld [vmem:[#allocation7 + $0xb0] sm:$0xff]
        %v785 = vld [vmem:[#allocation7 + $0xb8] sm:$0xff]
        %v786 = vld [vmem:[#allocation7 + $0xc0] sm:$0xff]
        %v787 = vld [vmem:[#allocation7 + $0xc8] sm:$0xff]
        %v788 = vld [vmem:[#allocation7 + $0xd0] sm:$0xff]
        %v789 = vld [vmem:[#allocation7 + $0xd8] sm:$0xff]
        %v790 = vld [vmem:[#allocation7 + $0xe0] sm:$0xff]
        %v791 = vld [vmem:[#allocation7 + $0xe8] sm:$0xff]
        %v792 = vld [vmem:[#allocation7 + $0xf0] sm:$0xff]
        %v793 = vld [vmem:[#allocation7 + $0xf8] sm:$0xff]
        %794 = vmatprep.subr.mxu0 0.0
        %795 = vmatpush1.msra.mxu0 %v762
        %796 = vmatprep.subr.mxu0 0.0
        %797 = vmatpush1.msra.mxu0 %v763
        %798 = vmatprep.subr.mxu0 0.0
        %799 = vmatpush1.msra.mxu0 %v764
        %800 = vmatprep.subr.mxu0 0.0
        %801 = vmatpush1.msra.mxu0 %v765
        %802 = vmatprep.subr.mxu0 0.0
        %803 = vmatpush1.msra.mxu0 %v766
        %804 = vmatprep.subr.mxu0 0.0
        %805 = vmatpush1.msra.mxu0 %v767
        %806 = vmatprep.subr.mxu0 0.0
        %807 = vmatpush1.msra.mxu0 %v768
        %808 = vmatprep.subr.mxu0 0.0
        %809 = vmatpush1.msra.mxu0 %v769
        %810 = vmatprep.subr.mxu0 0.0
        %811 = vmatpush1.msra.mxu0 %v770
        %812 = vmatprep.subr.mxu0 0.0
        %813 = vmatpush1.msra.mxu0 %v771
        %814 = vmatprep.subr.mxu0 0.0
        %815 = vmatpush1.msra.mxu0 %v772
        %816 = vmatprep.subr.mxu0 0.0
        %817 = vmatpush1.msra.mxu0 %v773
        %818 = vmatprep.subr.mxu0 0.0
        %819 = vmatpush1.msra.mxu0 %v774
        %820 = vmatprep.subr.mxu0 0.0
        %821 = vmatpush1.msra.mxu0 %v775
        %822 = vmatprep.subr.mxu0 0.0
        %823 = vmatpush1.msra.mxu0 %v776
        %824 = vmatprep.subr.mxu0 0.0
        %825 = vmatpush1.msra.mxu0 %v777
        %826 = vmatprep.subr.mxu0 0.0
        %827 = vmatpush1.msra.mxu0 %v778
        %828 = vmatprep.subr.mxu0 0.0
        %829 = vmatpush1.msra.mxu0 %v779
        %830 = vmatprep.subr.mxu0 0.0
        %831 = vmatpush1.msra.mxu0 %v780
        %832 = vmatprep.subr.mxu0 0.0
        %833 = vmatpush1.msra.mxu0 %v781
        %834 = vmatprep.subr.mxu0 0.0
        %835 = vmatpush1.msra.mxu0 %v782
        %836 = vmatprep.subr.mxu0 0.0
        %837 = vmatpush1.msra.mxu0 %v783
        %838 = vmatprep.subr.mxu0 0.0
        %839 = vmatpush1.msra.mxu0 %v784
        %840 = vmatprep.subr.mxu0 0.0
        %841 = vmatpush1.msra.mxu0 %v785
        %842 = vmatprep.subr.mxu0 0.0
        %843 = vmatpush1.msra.mxu0 %v786
        %844 = vmatprep.subr.mxu0 0.0
        %845 = vmatpush1.msra.mxu0 %v787
        %846 = vmatprep.subr.mxu0 0.0
        %847 = vmatpush1.msra.mxu0 %v788
        %848 = vmatprep.subr.mxu0 0.0
        %849 = vmatpush1.msra.mxu0 %v789
        %850 = vmatprep.subr.mxu0 0.0
        %851 = vmatpush1.msra.mxu0 %v790
        %852 = vmatprep.subr.mxu0 0.0
        %853 = vmatpush1.msra.mxu0 %v791
        %854 = vmatprep.subr.mxu0 0.0
        %855 = vmatpush1.msra.mxu0 %v792
        %856 = vmatprep.subr.mxu0 0.0
        %857 = vmatpush1.msra.mxu0 %v793
        %858 = vmatprep.mubr.f32.mxu0 %v755
        %859 = vmatmul.mubr.f32.gmra.mrb[0].mxu0 %v754
        %v860 = vpop.f32.mrb[0].mxu0
        %v861 = vadd.f32 0.0, %v860
        %v862 = vpop.f32.mrb[0].mxu0
        %863 = vmatprep.mubr.f32.mxu0 %v757
        %864 = vmatmul.mubr.f32.gmra.mrb[0].mxu0 %v756
        %v865 = vpop.f32.mrb[0].mxu0
        %v866 = vadd.f32 0.0, %v865
        %v867 = vpop.f32.mrb[0].mxu0
        %868 = vdwg.mxu0
        %869 = vst [vmem:[%s282] sm:$0xff] %v861
        %870 = vst [vmem:[%s282 + $0x8] sm:$0xff] %v866
        %s871 = sand.u32 %s124, 1
        %s872 = scalar_lea.sflag [#allocation4], %s871
        %s873 = sand.u32 %s124, 1
        %s874 = smul.addr %s873, 32
        %s875 = scalar_lea.vmem [#allocation8], %s874
        %s876 = sand.u32 %s150, 1
        %s877 = scalar_lea.sflag [#allocation10], %s876
        %s878 = sand.u32 %s150, 1
        %s879 = smul.addr %s878, 16
        %s880 = scalar_lea.vmem [#allocation9], %s879
        // Predicated region
        $region49: #{tpu_custom_call.1} parent=35 // pred_check
          %p881 = pneg %p134
        $region50: #{tpu_custom_call.1} parent=35 // pred_check_branch
          %883 = sbr.rel (%p881) target = $region52
        $region51: #{tpu_custom_call.1} parent=35 // pred_region
          %s884 = smul.u32 2, %s27
          %s886 = ssub.s32 512, 512
          %887 = vsyncadd %s872, %s886
          %s888 = smul.addr %s884, 2
          %s889 = smul.addr %s888, 128
          %s890 = scalar_lea.hbm %s4, %s889
          %s891 = sshll.u32 %s875, 4
          %s892 = int_to_ptr.vmem [resolvable:$true] %s891
          %897 = dma.vmem_to_hbm [thread:$0]  %s892, 512, %s890, %s872, 256, 256, 16
        $region52: #{tpu_custom_call.1} parent=35 // pred_fallthru
          _
        // Predicated region
        $region53: #{tpu_custom_call.1} parent=35 // pred_check
          %p898 = pneg %p160
        $region54: #{tpu_custom_call.1} parent=35 // pred_check_branch
          %900 = sbr.rel (%p898) target = $region56
        $region55: #{tpu_custom_call.1} parent=35 // pred_region
          %s901 = smul.u32 2, %s27
          %s903 = ssub.s32 256, 256
          %904 = vsyncadd %s877, %s903
          %s905 = smul.addr %s901, 128
          %s906 = scalar_lea.hbm %s5, %s905
          %s907 = sshll.u32 %s880, 4
          %s908 = int_to_ptr.vmem [resolvable:$true] %s907
          %913 = dma.vmem_to_hbm [thread:$0]  %s908, 256, %s906, %s877, 128, 128, 8
        $region56: #{tpu_custom_call.1} parent=35 // pred_fallthru
          _
      $region36: #{tpu_custom_call.1} parent=5 // pred_fallthru
        _
      %p914 = scmp.le.s32.totalorder 2, %s22
      // Predicated region
      $region57: #{tpu_custom_call.1} parent=5 // pred_check
        %p915 = pneg %p914
      $region58: #{tpu_custom_call.1} parent=5 // pred_check_branch
        %917 = sbr.rel (%p915) target = $region60
      $region59: #{tpu_custom_call.1} parent=5 // pred_region
        %s918 = ssub.s32 %s22, 2
        // Predicated region
        $region61: #{tpu_custom_call.1} parent=59 // pred_check
          %p919 = pneg %p140
        $region62: #{tpu_custom_call.1} parent=59 // pred_check_branch
          %921 = sbr.rel (%p919) target = $region64
        $region63: #{tpu_custom_call.1} parent=59 // pred_region
          %s922 = sand.u32 %s125, 1
          %s923 = scalar_lea.sflag [#allocation4], %s922
          %s924 = sand.u32 %s125, 1
          %s925 = smul.addr %s924, 32
          %s926 = scalar_lea.vmem [#allocation8], %s925
          %927 = dma.done %s923, 512
        $region64: #{tpu_custom_call.1} parent=59 // pred_fallthru
          _
        // Predicated region
        $region65: #{tpu_custom_call.1} parent=59 // pred_check
          %p928 = pneg %p166
        $region66: #{tpu_custom_call.1} parent=59 // pred_check_branch
          %930 = sbr.rel (%p928) target = $region68
        $region67: #{tpu_custom_call.1} parent=59 // pred_region
          %s931 = sand.u32 %s151, 1
          %s932 = scalar_lea.sflag [#allocation10], %s931
          %s933 = sand.u32 %s151, 1
          %s934 = smul.addr %s933, 16
          %s935 = scalar_lea.vmem [#allocation9], %s934
          %936 = dma.done %s932, 256
        $region68: #{tpu_custom_call.1} parent=59 // pred_fallthru
          _
      $region60: #{tpu_custom_call.1} parent=5 // pred_fallthru
        _
    $region6: #{tpu_custom_call.1} parent=1 // loop_footer
      %s26 = sadd.s32 1, %s22
    $region7: #{tpu_custom_call.1} parent=1 // loop_footer_branch
      %21 = sbr.rel target = $region3
    $region8: #{tpu_custom_call.1} parent=1 // loop_exit
      _
    %937 = vsyncpa [#allocation3], 1
    %s938 = scalar_lea.sflag [#allocation3], 1
    %939 = vsyncpa %s938, 1
    %940 = vsyncpa [#allocation6], 1
    %941 = vsyncpa [#allocation4], 1
    %s942 = scalar_lea.sflag [#allocation4], 1
    %943 = vsyncpa %s942, 1
    %944 = vsyncpa [#allocation10], 1
    %s945 = scalar_lea.sflag [#allocation10], 1
    %946 = vsyncpa %s945, 1

</llo_original>
